<compile_context>
chip_gen: v7x
topology: tpu7x:2x2x1
jax: 0.10.0
libtpu: 0.0.40
codegen_flags: <defaults>
</compile_context>

<pallas_src>
import functools

import jax
import jax.numpy as jnp
from jax import lax
from jax.experimental import pallas as pl
from jax.experimental.pallas import tpu as pltpu

LANE = 128
VMEM_LIMIT = 32 * 1024 * 1024  # explicit; safe on v5e/v6e/v7x for these tiles


def _round_up(v, m):
    return (v + m - 1) // m * m


# ----------------------------- kernels --------------------------------------

def degree_kernel(adj_ref, dis_ref):
    """D^{-1/2} of (A + I) from one full-width bf16 row strip (single pass)."""
    deg = jnp.sum(adj_ref[...].astype(jnp.float32), axis=1, keepdims=True)
    # +1.0 accounts for the self loop (A + I); the identity is never built.
    dis_ref[...] = lax.rsqrt(deg + 1.0)


def xw_scale_kernel(x_ref, w_ref, s_ref, m_ref):
    """M = D^{-1/2} * (X @ W) -> bf16 output (f32 MXU accumulation)."""
    xw = jnp.dot(x_ref[...].astype(jnp.bfloat16),
                 w_ref[...].astype(jnp.bfloat16),
                 preferred_element_type=jnp.float32)
    m_ref[...] = (s_ref[...] * xw).astype(m_ref.dtype)


def propagate_kernel(adj_ref, m_col_ref, m_row_ref, s_ref, b_ref, out_ref,
                     *scratch, relu):
    """out = act(s * ((A @ M) + M) + b), accumulated over adjacency col tiles.

    With M = s * (X @ W) this equals act(D^{-1/2}(A+I)D^{-1/2} X W + b).
    If the output is f32, it is used directly as the accumulator (its block
    is resident across k); a bf16 output gets an f32 VMEM scratch instead.
    """
    acc_ref = scratch[0] if scratch else out_ref
    k = pl.program_id(1)

    @pl.when(k == 0)
    def _():
        acc_ref[...] = jnp.zeros_like(acc_ref)

    # adj and m_col both arrive bf16; f32 accumulation on the MXU.
    acc_ref[...] += jnp.dot(adj_ref[...], m_col_ref[...],
                            preferred_element_type=jnp.float32)

    @pl.when(k == pl.num_programs(1) - 1)
    def _():
        out = (s_ref[...] * (acc_ref[...] + m_row_ref[...].astype(jnp.float32))
               + b_ref[...])
        if relu:
            out = jnp.maximum(out, 0.0)
        out_ref[...] = out.astype(out_ref.dtype)


def decode_kernel(zi_ref, zj_ref, out_ref):
    """InnerProductDecoder.forward_all tile: sigmoid(Z_i @ Z_j^T).

    (1,1)-contraction dot_general (no transpose); sigmoid written as
    exp(-x) + approximate reciprocal so both transcendentals live on the EUP
    slot.  Elementwise math stays f32 (no bf16 VPU/EUP on v5e).
    """
    logits = lax.dot_general(
        zi_ref[...], zj_ref[...],
        dimension_numbers=(((1,), (1,)), ((), ())),
        preferred_element_type=jnp.float32)
    probs = pl.reciprocal(1.0 + jnp.exp(-logits), approx=True)
    out_ref[...] = probs.astype(out_ref.dtype)


# ----------------------------- pallas_call wrappers --------------------------

def _cparams(sem):
    # TODO(synk): on v7x, check both TensorCores are used; if "parallel" alone
    # does not shard the row axis, switch it to pltpu.CORE_PARALLEL.
    return pltpu.CompilerParams(dimension_semantics=sem,
                                vmem_limit_bytes=VMEM_LIMIT)


def _degree_row_tile(n_p, tile):
    """Largest power-of-two row strip whose double-buffered bf16 full-width
    panel stays under ~8 MiB of VMEM."""
    tm = tile
    while tm > 8 and 2 * tm * n_p * 2 > (8 << 20):
        tm //= 2
    return max(tm, 8)


def _degrees(adj_bf16, *, tile):
    n = adj_bf16.shape[0]
    tm = _degree_row_tile(n, tile)
    return pl.pallas_call(
        degree_kernel,
        out_shape=jax.ShapeDtypeStruct((n, 1), jnp.float32),
        grid_spec=pltpu.PrefetchScalarGridSpec(
            num_scalar_prefetch=0,
            grid=(n // tm,),
            in_specs=[pl.BlockSpec((tm, n), lambda i: (i, 0))],
            out_specs=pl.BlockSpec((tm, 1), lambda i: (i, 0))),
        compiler_params=_cparams(("parallel",)),
    )(adj_bf16)


def _xw_scale(x, w, s, *, tm):
    n, f_in = x.shape
    f_out = w.shape[1]
    return pl.pallas_call(
        xw_scale_kernel,
        out_shape=jax.ShapeDtypeStruct((n, f_out), jnp.bfloat16),
        grid_spec=pltpu.PrefetchScalarGridSpec(
            num_scalar_prefetch=0,
            grid=(n // tm,),
            in_specs=[pl.BlockSpec((tm, f_in), lambda i: (i, 0)),
                      pl.BlockSpec((f_in, f_out), lambda i: (0, 0)),
                      pl.BlockSpec((tm, 1), lambda i: (i, 0))],
            out_specs=pl.BlockSpec((tm, f_out), lambda i: (i, 0))),
        compiler_params=_cparams(("parallel",)),
    )(x, w, s)


def _propagate(adj_bf16, m, s, b, *, relu, out_dtype, tm, tk):
    n = adj_bf16.shape[0]
    f = m.shape[1]
    # f32 output -> accumulate in place (no scratch); bf16 output -> f32 scratch.
    use_scratch = jnp.dtype(out_dtype) != jnp.dtype(jnp.float32)
    scratch = [pltpu.VMEM((tm, f), jnp.float32)] if use_scratch else []
    kernel = functools.partial(propagate_kernel, relu=relu)
    return pl.pallas_call(
        kernel,
        out_shape=jax.ShapeDtypeStruct((n, f), out_dtype),
        grid_spec=pltpu.PrefetchScalarGridSpec(
            num_scalar_prefetch=0,
            grid=(n // tm, n // tk),
            in_specs=[pl.BlockSpec((tm, tk), lambda i, k: (i, k)),   # A panel (bf16)
                      pl.BlockSpec((tk, f), lambda i, k: (k, 0)),    # M cols  (bf16)
                      pl.BlockSpec((tm, f), lambda i, k: (i, 0)),    # M rows (+I)
                      pl.BlockSpec((tm, 1), lambda i, k: (i, 0)),    # s rows
                      pl.BlockSpec((1, f), lambda i, k: (0, 0))],    # bias
            out_specs=pl.BlockSpec((tm, f), lambda i, k: (i, 0)),
            scratch_shapes=scratch),
        compiler_params=_cparams(("parallel", "arbitrary")),
    )(adj_bf16, m, m, s, b)


def gae_encode(adj, x, params, *, tile=512):
    """GAE.forward()/encode(): returns (Z, Z_padded_lane_dense_bf16)."""
    assert tile >= 128 and (tile & (tile - 1)) == 0, "tile must be a pow2 >= 128"
    n, f_in = x.shape
    hidden = params["w1"].shape[1]
    latent = params["w2"].shape[1]

    n_p = _round_up(n, tile)
    f_in_p = _round_up(f_in, LANE)
    h_p = _round_up(hidden, LANE)
    l_p = _round_up(latent, LANE)

    # Zero-padding (pure layout plumbing; zeros do not change the math —
    # padded nodes have no edges and padded feature lanes are zero).
    adj_p = jnp.zeros((n_p, n_p), jnp.bfloat16).at[:n, :n].set(
        adj.astype(jnp.bfloat16))
    x_p = jnp.zeros((n_p, f_in_p), jnp.float32).at[:n, :f_in].set(x)
    w1 = jnp.zeros((f_in_p, h_p), jnp.float32).at[:f_in, :hidden].set(
        params["w1"])
    b1 = jnp.zeros((1, h_p), jnp.float32).at[:, :hidden].set(params["b1"])
    w2 = jnp.zeros((h_p, l_p), jnp.float32).at[:hidden, :latent].set(
        params["w2"])
    b2 = jnp.zeros((1, l_p), jnp.float32).at[:, :latent].set(params["b2"])

    s = _degrees(adj_p, tile=tile)                              # (N,1) D^{-1/2}
    m1 = _xw_scale(x_p, w1, s, tm=tile)                         # bf16 s*(X@W1)
    h = _propagate(adj_p, m1, s, b1, relu=True,
                   out_dtype=jnp.float32, tm=tile, tk=tile)     # f32 (in-place acc)
    m2 = _xw_scale(h, w2, s, tm=tile)                           # bf16 s*(H@W2)
    z_p = _propagate(adj_p, m2, s, b2, relu=False,
                     out_dtype=jnp.bfloat16, tm=tile, tk=tile)  # bf16 Z for decode
    # NOTE: padded ROWS of z_p are not zero (bias propagates); they are only
    # safe because padded nodes have no edges and decode slices to [:n, :n].
    return z_p[:n, :latent].astype(jnp.float32), z_p


def gae_forward(adj, x, params, *, tile=512):
    """Alias for encode (matches GAE.forward)."""
    return gae_encode(adj, x, params, tile=tile)[0]


def gae_decode_all_padded(z_pad, n, *, tile=512, out_dtype=jnp.float32):
    """GAE.decode via InnerProductDecoder over all node pairs.

    Takes the padded lane-dense bf16 Z straight from gae_encode (no relayout,
    no per-step casts).  Padded lanes of Z are zero -> no effect on the dot.
    """
    n_p, l_p = z_pad.shape
    tile = min(tile, n_p)
    assert n_p % tile == 0
    probs = pl.pallas_call(
        decode_kernel,
        out_shape=jax.ShapeDtypeStruct((n_p, n_p), out_dtype),
        grid_spec=pltpu.PrefetchScalarGridSpec(
            num_scalar_prefetch=0,
            grid=(n_p // tile, n_p // tile),
            in_specs=[pl.BlockSpec((tile, l_p), lambda i, j: (i, 0)),
                      pl.BlockSpec((tile, l_p), lambda i, j: (j, 0))],
            out_specs=pl.BlockSpec((tile, tile), lambda i, j: (i, j))),
        compiler_params=_cparams(("parallel", "parallel")),
    )(z_pad, z_pad)
    return probs[:n, :n]


def init_params(key, f_in, hidden, latent):
    """Deterministic Glorot-style init (GAE.reset_parameters analogue)."""
    k1, k2 = jax.random.split(key)
    s1 = (6.0 / (f_in + hidden)) ** 0.5
    s2 = (6.0 / (hidden + latent)) ** 0.5
    return {
        "w1": jax.random.uniform(k1, (f_in, hidden), jnp.float32, -s1, s1),
        "b1": jnp.full((1, hidden), 0.05, jnp.float32),
        "w2": jax.random.uniform(k2, (hidden, latent), jnp.float32, -s2, s2),
        "b2": jnp.full((1, latent), -0.02, jnp.float32),
    }


# ------------------------------- main ----------------------------------------

if __name__ == "__main__":
    N, F_IN, HIDDEN, LATENT = 1000, 16, 64, 32
    TILE = 512  # N pads to 1024 -> real 2x2 grids in propagate and decode

    key = jax.random.PRNGKey(0)
    k_x, k_a, k_p = jax.random.split(key, 3)

    x = jax.random.normal(k_x, (N, F_IN), jnp.float32)
    # Random symmetric 0/1 adjacency without self-loops.
    a_upper = (jax.random.uniform(k_a, (N, N)) < 0.1).astype(jnp.float32)
    adj = jnp.triu(a_upper, 1)
    adj = adj + adj.T

    params = init_params(k_p, F_IN, HIDDEN, LATENT)

    # forward() == encode()
    z, z_pad = gae_encode(adj, x, params, tile=TILE)
    jax.block_until_ready(z)

    # decode() (inner-product decoder over all pairs), fed the bf16 lane-dense Z.
    probs = gae_decode_all_padded(z_pad, N, tile=TILE)
    jax.block_until_ready(probs)

    # Sanity check vs. pure-JAX f32 reference.  bf16 MXU inputs / bf16 M & Z
    # storage (with f32 accumulation) are intentional, so compare with a
    # relaxed tolerance.
    eye = jnp.eye(N, dtype=jnp.float32)
    a_hat = adj + eye
    d = jnp.sum(a_hat, axis=1, keepdims=True)
    dis = 1.0 / jnp.sqrt(d)
    a_hat = a_hat * dis * dis.T
    h_ref = jnp.maximum(a_hat @ (x @ params["w1"]) + params["b1"], 0.0)
    z_ref = a_hat @ (h_ref @ params["w2"]) + params["b2"]
    p_ref = jax.nn.sigmoid(z_ref @ z_ref.T)

    assert z.shape == (N, LATENT) and probs.shape == (N, N)
    assert jnp.allclose(z, z_ref, atol=3e-2, rtol=3e-2)
    assert jnp.allclose(probs, p_ref, atol=3e-2, rtol=3e-2)

    print("KERNEL_OK")
</pallas_src>

<mosaic_0001>
module attributes {stable_mosaic.version = 11 : i64} {
  func.func @degree_kernel(%arg0: i32, %arg1: memref<512x1024xbf16, #tpu.memory_space<vmem>>, %arg2: memref<512x1xf32, #tpu.memory_space<vmem>>) attributes {dimension_semantics = [#tpu.dimension_semantics<parallel>], iteration_bounds = array<i64: 2>, scalar_prefetch = 0 : i64, scratch_operands = 0 : i64, tpu.core_type = #tpu.core_type<tc>, window_params = [{transform_indices = @transform_0, window_bounds = array<i64: 512, 1024>}, {transform_indices = @transform_1, window_bounds = array<i64: 512, 1>}]} {
    %c0 = arith.constant 0 : index
    %c0_0 = arith.constant 0 : index
    %0 = vector.load %arg1[%c0, %c0_0] : memref<512x1024xbf16, #tpu.memory_space<vmem>>, vector<512x1024xbf16>
    %1 = arith.extf %0 : vector<512x1024xbf16> to vector<512x1024xf32>
    %cst = arith.constant dense<0.000000e+00> : vector<512xf32>
    %2 = vector.multi_reduction <add>, %1, %cst [1] : vector<512x1024xf32> to vector<512xf32>
    %3 = vector.shape_cast %2 : vector<512xf32> to vector<512x1xf32>
    %cst_1 = arith.constant 1.000000e+00 : f32
    %4 = vector.broadcast %cst_1 : f32 to vector<512x1xf32>
    %5 = arith.addf %3, %4 : vector<512x1xf32>
    %6 = math.rsqrt %5 : vector<512x1xf32>
    %c0_2 = arith.constant 0 : index
    %c0_3 = arith.constant 0 : index
    %7 = vector.load %arg2[%c0_2, %c0_3] : memref<512x1xf32, #tpu.memory_space<vmem>>, vector<512x1xf32>
    tpu.vector_store %arg2[%c0_2, %c0_3], %6 {strides = array<i32>} : memref<512x1xf32, #tpu.memory_space<vmem>>, vector<512x1xf32>,
    return
  }
  func.func @transform_0(%arg0: i32) -> (i32, i32) {
    %c0_i32 = arith.constant 0 : i32
    %c0_i32_0 = arith.constant 0 : i32
    return %arg0, %c0_i32 : i32, i32
  }
  func.func @transform_1(%arg0: i32) -> (i32, i32) {
    %c0_i32 = arith.constant 0 : i32
    %c0_i32_0 = arith.constant 0 : i32
    return %arg0, %c0_i32 : i32, i32
  }
}

</mosaic_0001>

<llo_original>
// kernel: tpu_custom_call.1
$region0: #{tpu_custom_call.1}
  #allocation0 [shape = 'u32[]', space=smem, size = 0x4, offset = 0x4, fixed_abs, tag = 'smem constant byte address 0x4 - core index']
  #allocation1 [shape = 'u32[144,128]{1,0:T(1,128)}', space=vmem, size = 0x12000, scoped, tag = 'internal scratch']
  %s0 = inlined_call_operand.hbm [shape: bf16[1024,1024], index: 0, kind: input, shape index: {}]
  %s1 = inlined_call_operand.vmem [shape: f32[1024,1], index: 1, kind: output, shape index: {}]
  %s2 = sld [smem:[#allocation0]]
  $region41: #{tpu_custom_call.1} parent=0
    _
  %s4 = ssub.s32 1, %s2
  %s5 = scalar_select 0, %s4, %s2
  $region1: #{tpu_custom_call.1} parent=0
    #allocation2 [shape = 'u8[2097152]{0}', space=vmem, size = 0x200000, scoped, tag = 'input window, operand 0']
    #allocation3 [shape = 's32[2]{0}', space=sflag, size = 0x8, scoped, tag = 'scoped memory for tpu_custom_call.1']
    %6 = vsyncpa [#allocation3], 0
    %s7 = scalar_lea.sflag [#allocation3], 1
    %8 = vsyncpa %s7, 0
    loop: start=0, step=1, limit=4
    $region2: #{tpu_custom_call.1} parent=1 // loop_pre_header
      _
    $region3: #{tpu_custom_call.1} parent=1 // loop_header
      %s10 = sphi 0, %s14
      %p11 = scmp.ge.s32.totalorder %s10, 4
      %s20 = sphi 0, %s22
      %s23 = sphi 0, %s20
      %s24 = sphi 0, %s23
      %s40 = sphi 0, %s24
      %s46 = sphi 0, %s48
      %s49 = sphi 0, %s46
      %s50 = sphi 0, %s49
      %s66 = sphi 0, %s50
    $region4: #{tpu_custom_call.1} parent=1 // loop_header_branch
      %13 = sbr.rel (%p11) target = $region8
    $region5: #{tpu_custom_call.1} parent=1 // loop_body
      %s15 = ssub.s32 %s10, 1
      %s16 = ssub.s32 %s10, 2
      %s17 = sadd.s32 %s10, 1
      %s18 = ssub.s32 %s10, %s17
      %p19 = scmp.eq.s32.totalorder %s18, 0
      %s21 = sadd.s32 %s20, 1
      %s22 = scalar_select %p19, %s20, %s21
      %p25 = pneg %p19
      %p26 = scmp.eq.s32.totalorder %s10, 1
      %p27 = por %p25, %p26
      %p28 = scmp.ne.s32.totalorder %s20, %s23
      %p29 = scmp.eq.s32.totalorder %s10, 0
      %p30 = por %p28, %p29
      %p31 = scmp.ne.s32.totalorder %s20, %s23
      %p32 = scmp.eq.s32.totalorder %s15, 1
      %p33 = por %p31, %p32
      %p34 = scmp.ne.s32.totalorder %s23, %s24
      %p35 = scmp.eq.s32.totalorder %s15, 0
      %p36 = por %p34, %p35
      %p37 = scmp.ne.s32.totalorder %s23, %s24
      %p38 = scmp.eq.s32.totalorder %s16, 1
      %p39 = por %p37, %p38
      %p41 = scmp.ne.s32.totalorder %s24, %s40
      %p42 = scmp.eq.s32.totalorder %s16, 0
      %p43 = por %p41, %p42
      %s44 = ssub.s32 %s10, %s17
      %p45 = scmp.eq.s32.totalorder %s44, 0
      %s47 = sadd.s32 %s46, 1
      %s48 = scalar_select %p45, %s46, %s47
      %p51 = pneg %p45
      %p52 = scmp.eq.s32.totalorder %s10, 1
      %p53 = por %p51, %p52
      %p54 = scmp.ne.s32.totalorder %s46, %s49
      %p55 = scmp.eq.s32.totalorder %s10, 0
      %p56 = por %p54, %p55
      %p57 = scmp.ne.s32.totalorder %s46, %s49
      %p58 = scmp.eq.s32.totalorder %s15, 1
      %p59 = por %p57, %p58
      %p60 = scmp.ne.s32.totalorder %s49, %s50
      %p61 = scmp.eq.s32.totalorder %s15, 0
      %p62 = por %p60, %p61
      %p63 = scmp.ne.s32.totalorder %s49, %s50
      %p64 = scmp.eq.s32.totalorder %s16, 1
      %p65 = por %p63, %p64
      %p67 = scmp.ne.s32.totalorder %s50, %s66
      %p68 = scmp.eq.s32.totalorder %s16, 0
      %p69 = por %p67, %p68
      %p70 = scmp.le.s32.totalorder 1, %s10
      %p71 = scmp.lt.s32.totalorder %s10, 3
      %p72 = pnand %p70, %p71
      %p73 = pneg %p72
      // Predicated region
      $region9: #{tpu_custom_call.1} parent=5 // pred_check
        _
      $region10: #{tpu_custom_call.1} parent=5 // pred_check_branch
        %75 = sbr.rel (%p72) target = $region12
      $region11: #{tpu_custom_call.1} parent=5 // pred_region
        %s76 = ssub.s32 %s10, 1
      $region12: #{tpu_custom_call.1} parent=5 // pred_fallthru
        _
      %p77 = scmp.lt.s32.totalorder %s10, 2
      // Predicated region
      $region13: #{tpu_custom_call.1} parent=5 // pred_check
        %p78 = pneg %p77
      $region14: #{tpu_custom_call.1} parent=5 // pred_check_branch
        %80 = sbr.rel (%p78) target = $region16
      $region15: #{tpu_custom_call.1} parent=5 // pred_region
        // Predicated region
        $region17: #{tpu_custom_call.1} parent=15 // pred_check
          %p81 = pneg %p30
        $region18: #{tpu_custom_call.1} parent=15 // pred_check_branch
          %83 = sbr.rel (%p81) target = $region20
        $region19: #{tpu_custom_call.1} parent=15 // pred_region
          %s84 = sand.u32 %s20, 1
          %s85 = scalar_lea.sflag [#allocation3], %s84
          %s86 = sand.u32 %s20, 1
          %s87 = smul.addr %s86, 2048
          %s88 = scalar_lea.vmem [#allocation2], %s87
          %s89 = smul.u32 64, %s10
          %s91 = ssub.s32 32768, 32768
          %92 = vsyncadd %s85, %s91
          %s93 = smul.addr %s89, 8
          %s94 = smul.addr %s93, 64
          %s95 = scalar_lea.hbm %s0, %s94
          %s96 = sshll.u32 %s88, 4
          %s97 = int_to_ptr.vmem [resolvable:$true] %s96
          %102 = dma.hbm_to_vmem [thread:$0]  %s95, 32768, %s97, %s85, 512, 512, 32
        $region20: #{tpu_custom_call.1} parent=15 // pred_fallthru
          _
      $region16: #{tpu_custom_call.1} parent=5 // pred_fallthru
        _
      %p103 = scmp.le.s32.totalorder 1, %s10
      %p104 = scmp.lt.s32.totalorder %s10, 3
      %p105 = pnand %p103, %p104
      %p106 = pneg %p105
      // Predicated region
      $region21: #{tpu_custom_call.1} parent=5 // pred_check
        _
      $region22: #{tpu_custom_call.1} parent=5 // pred_check_branch
        %108 = sbr.rel (%p105) target = $region24
      $region23: #{tpu_custom_call.1} parent=5 // pred_region
        %s109 = ssub.s32 %s10, 1
        %s110 = sand.u32 %s23, 1
        %s111 = scalar_lea.sflag [#allocation3], %s110
        %s112 = sand.u32 %s23, 1
        %s113 = smul.addr %s112, 2048
        %s114 = scalar_lea.vmem [#allocation2], %s113
        // Predicated region
        $region25: #{tpu_custom_call.1} parent=23 // pred_check
          %p115 = pneg %p36
        $region26: #{tpu_custom_call.1} parent=23 // pred_check_branch
          %117 = sbr.rel (%p115) target = $region28
        $region27: #{tpu_custom_call.1} parent=23 // pred_region
          %118 = dma.done %s111, 32768
        $region28: #{tpu_custom_call.1} parent=23 // pred_fallthru
          _
        %s119 = sand.u32 %s23, 1
        %s120 = scalar_lea.sflag [#allocation3], %s119
        %s121 = sand.u32 %s23, 1
        %s122 = smul.addr %s121, 2048
        %s123 = scalar_lea.vmem [#allocation2], %s122
        %p124 = pneg %p36
        %p125 = pneg %p33
        %p126 = pneg %p62
        %p127 = pneg %p59
        %s128 = smul.u32 64, %s15
        %p129 = scmp.lt.s32.totalorder %s128, 127
        %s130 = scalar_select %p129, %s128, 127
        %s131 = smul.addr %s130, 8
        %s132 = scalar_lea.vmem %s1, %s131
        %s133 = smul.u32 64, %s15
        %s134 = smul.u32 64, %s15
        %p135 = scmp.lt.s32.totalorder %s134, 127
        %s136 = scalar_select %p135, %s134, 127
        %s137 = smul.addr %s136, 8
        %s138 = scalar_lea.vmem %s1, %s137
        %s139 = smul.u32 64, %s15
        %v140 = vld [vmem:[%s114] sm:$0xff]
        %v141 = vld [vmem:[%s114 + $0x8] sm:$0xff]
        %v142 = vld [vmem:[%s114 + $0x10] sm:$0xff]
        %v143 = vld [vmem:[%s114 + $0x18] sm:$0xff]
        %v144 = vld [vmem:[%s114 + $0x20] sm:$0xff]
        %v145 = vld [vmem:[%s114 + $0x28] sm:$0xff]
        %v146 = vld [vmem:[%s114 + $0x30] sm:$0xff]
        %v147 = vld [vmem:[%s114 + $0x38] sm:$0xff]
        %v148 = vld [vmem:[%s114 + $0x40] sm:$0xff]
        %v149 = vld [vmem:[%s114 + $0x48] sm:$0xff]
        %v150 = vld [vmem:[%s114 + $0x50] sm:$0xff]
        %v151 = vld [vmem:[%s114 + $0x58] sm:$0xff]
        %v152 = vld [vmem:[%s114 + $0x60] sm:$0xff]
        %v153 = vld [vmem:[%s114 + $0x68] sm:$0xff]
        %v154 = vld [vmem:[%s114 + $0x70] sm:$0xff]
        %v155 = vld [vmem:[%s114 + $0x78] sm:$0xff]
        %v156 = vld [vmem:[%s114 + $0x80] sm:$0xff]
        %v157 = vld [vmem:[%s114 + $0x88] sm:$0xff]
        %v158 = vld [vmem:[%s114 + $0x90] sm:$0xff]
        %v159 = vld [vmem:[%s114 + $0x98] sm:$0xff]
        %v160 = vld [vmem:[%s114 + $0xa0] sm:$0xff]
        %v161 = vld [vmem:[%s114 + $0xa8] sm:$0xff]
        %v162 = vld [vmem:[%s114 + $0xb0] sm:$0xff]
        %v163 = vld [vmem:[%s114 + $0xb8] sm:$0xff]
        %v164 = vld [vmem:[%s114 + $0xc0] sm:$0xff]
        %v165 = vld [vmem:[%s114 + $0xc8] sm:$0xff]
        %v166 = vld [vmem:[%s114 + $0xd0] sm:$0xff]
        %v167 = vld [vmem:[%s114 + $0xd8] sm:$0xff]
        %v168 = vld [vmem:[%s114 + $0xe0] sm:$0xff]
        %v169 = vld [vmem:[%s114 + $0xe8] sm:$0xff]
        %v170 = vld [vmem:[%s114 + $0xf0] sm:$0xff]
        %v171 = vld [vmem:[%s114 + $0xf8] sm:$0xff]
        %v172 = vld [vmem:[%s114 + $0x100] sm:$0xff]
        %v173 = vld [vmem:[%s114 + $0x108] sm:$0xff]
        %v174 = vld [vmem:[%s114 + $0x110] sm:$0xff]
        %v175 = vld [vmem:[%s114 + $0x118] sm:$0xff]
        %v176 = vld [vmem:[%s114 + $0x120] sm:$0xff]
        %v177 = vld [vmem:[%s114 + $0x128] sm:$0xff]
        %v178 = vld [vmem:[%s114 + $0x130] sm:$0xff]
        %v179 = vld [vmem:[%s114 + $0x138] sm:$0xff]
        %v180 = vld [vmem:[%s114 + $0x140] sm:$0xff]
        %v181 = vld [vmem:[%s114 + $0x148] sm:$0xff]
        %v182 = vld [vmem:[%s114 + $0x150] sm:$0xff]
        %v183 = vld [vmem:[%s114 + $0x158] sm:$0xff]
        %v184 = vld [vmem:[%s114 + $0x160] sm:$0xff]
        %v185 = vld [vmem:[%s114 + $0x168] sm:$0xff]
        %v186 = vld [vmem:[%s114 + $0x170] sm:$0xff]
        %v187 = vld [vmem:[%s114 + $0x178] sm:$0xff]
        %v188 = vld [vmem:[%s114 + $0x180] sm:$0xff]
        %v189 = vld [vmem:[%s114 + $0x188] sm:$0xff]
        %v190 = vld [vmem:[%s114 + $0x190] sm:$0xff]
        %v191 = vld [vmem:[%s114 + $0x198] sm:$0xff]
        %v192 = vld [vmem:[%s114 + $0x1a0] sm:$0xff]
        %v193 = vld [vmem:[%s114 + $0x1a8] sm:$0xff]
        %v194 = vld [vmem:[%s114 + $0x1b0] sm:$0xff]
        %v195 = vld [vmem:[%s114 + $0x1b8] sm:$0xff]
        %v196 = vld [vmem:[%s114 + $0x1c0] sm:$0xff]
        %v197 = vld [vmem:[%s114 + $0x1c8] sm:$0xff]
        %v198 = vld [vmem:[%s114 + $0x1d0] sm:$0xff]
        %v199 = vld [vmem:[%s114 + $0x1d8] sm:$0xff]
        %v200 = vld [vmem:[%s114 + $0x1e0] sm:$0xff]
        %v201 = vld [vmem:[%s114 + $0x1e8] sm:$0xff]
        %v202 = vld [vmem:[%s114 + $0x1f0] sm:$0xff]
        %v203 = vld [vmem:[%s114 + $0x1f8] sm:$0xff]
        %v204 = vld [vmem:[%s114 + $0x200] sm:$0xff]
        %v205 = vld [vmem:[%s114 + $0x208] sm:$0xff]
        %v206 = vld [vmem:[%s114 + $0x210] sm:$0xff]
        %v207 = vld [vmem:[%s114 + $0x218] sm:$0xff]
        %v208 = vld [vmem:[%s114 + $0x220] sm:$0xff]
        %v209 = vld [vmem:[%s114 + $0x228] sm:$0xff]
        %v210 = vld [vmem:[%s114 + $0x230] sm:$0xff]
        %v211 = vld [vmem:[%s114 + $0x238] sm:$0xff]
        %v212 = vld [vmem:[%s114 + $0x240] sm:$0xff]
        %v213 = vld [vmem:[%s114 + $0x248] sm:$0xff]
        %v214 = vld [vmem:[%s114 + $0x250] sm:$0xff]
        %v215 = vld [vmem:[%s114 + $0x258] sm:$0xff]
        %v216 = vld [vmem:[%s114 + $0x260] sm:$0xff]
        %v217 = vld [vmem:[%s114 + $0x268] sm:$0xff]
        %v218 = vld [vmem:[%s114 + $0x270] sm:$0xff]
        %v219 = vld [vmem:[%s114 + $0x278] sm:$0xff]
        %v220 = vld [vmem:[%s114 + $0x280] sm:$0xff]
        %v221 = vld [vmem:[%s114 + $0x288] sm:$0xff]
        %v222 = vld [vmem:[%s114 + $0x290] sm:$0xff]
        %v223 = vld [vmem:[%s114 + $0x298] sm:$0xff]
        %v224 = vld [vmem:[%s114 + $0x2a0] sm:$0xff]
        %v225 = vld [vmem:[%s114 + $0x2a8] sm:$0xff]
        %v226 = vld [vmem:[%s114 + $0x2b0] sm:$0xff]
        %v227 = vld [vmem:[%s114 + $0x2b8] sm:$0xff]
        %v228 = vld [vmem:[%s114 + $0x2c0] sm:$0xff]
        %v229 = vld [vmem:[%s114 + $0x2c8] sm:$0xff]
        %v230 = vld [vmem:[%s114 + $0x2d0] sm:$0xff]
        %v231 = vld [vmem:[%s114 + $0x2d8] sm:$0xff]
        %v232 = vld [vmem:[%s114 + $0x2e0] sm:$0xff]
        %v233 = vld [vmem:[%s114 + $0x2e8] sm:$0xff]
        %v234 = vld [vmem:[%s114 + $0x2f0] sm:$0xff]
        %v235 = vld [vmem:[%s114 + $0x2f8] sm:$0xff]
        %v236 = vld [vmem:[%s114 + $0x300] sm:$0xff]
        %v237 = vld [vmem:[%s114 + $0x308] sm:$0xff]
        %v238 = vld [vmem:[%s114 + $0x310] sm:$0xff]
        %v239 = vld [vmem:[%s114 + $0x318] sm:$0xff]
        %v240 = vld [vmem:[%s114 + $0x320] sm:$0xff]
        %v241 = vld [vmem:[%s114 + $0x328] sm:$0xff]
        %v242 = vld [vmem:[%s114 + $0x330] sm:$0xff]
        %v243 = vld [vmem:[%s114 + $0x338] sm:$0xff]
        %v244 = vld [vmem:[%s114 + $0x340] sm:$0xff]
        %v245 = vld [vmem:[%s114 + $0x348] sm:$0xff]
        %v246 = vld [vmem:[%s114 + $0x350] sm:$0xff]
        %v247 = vld [vmem:[%s114 + $0x358] sm:$0xff]
        %v248 = vld [vmem:[%s114 + $0x360] sm:$0xff]
        %v249 = vld [vmem:[%s114 + $0x368] sm:$0xff]
        %v250 = vld [vmem:[%s114 + $0x370] sm:$0xff]
        %v251 = vld [vmem:[%s114 + $0x378] sm:$0xff]
        %v252 = vld [vmem:[%s114 + $0x380] sm:$0xff]
        %v253 = vld [vmem:[%s114 + $0x388] sm:$0xff]
        %v254 = vld [vmem:[%s114 + $0x390] sm:$0xff]
        %v255 = vld [vmem:[%s114 + $0x398] sm:$0xff]
        %v256 = vld [vmem:[%s114 + $0x3a0] sm:$0xff]
        %v257 = vld [vmem:[%s114 + $0x3a8] sm:$0xff]
        %v258 = vld [vmem:[%s114 + $0x3b0] sm:$0xff]
        %v259 = vld [vmem:[%s114 + $0x3b8] sm:$0xff]
        %v260 = vld [vmem:[%s114 + $0x3c0] sm:$0xff]
        %v261 = vld [vmem:[%s114 + $0x3c8] sm:$0xff]
        %v262 = vld [vmem:[%s114 + $0x3d0] sm:$0xff]
        %v263 = vld [vmem:[%s114 + $0x3d8] sm:$0xff]
        %v264 = vld [vmem:[%s114 + $0x3e0] sm:$0xff]
        %v265 = vld [vmem:[%s114 + $0x3e8] sm:$0xff]
        %v266 = vld [vmem:[%s114 + $0x3f0] sm:$0xff]
        %v267 = vld [vmem:[%s114 + $0x3f8] sm:$0xff]
        %v268 = vld [vmem:[%s114 + $0x400] sm:$0xff]
        %v269 = vld [vmem:[%s114 + $0x408] sm:$0xff]
        %v270 = vld [vmem:[%s114 + $0x410] sm:$0xff]
        %v271 = vld [vmem:[%s114 + $0x418] sm:$0xff]
        %v272 = vld [vmem:[%s114 + $0x420] sm:$0xff]
        %v273 = vld [vmem:[%s114 + $0x428] sm:$0xff]
        %v274 = vld [vmem:[%s114 + $0x430] sm:$0xff]
        %v275 = vld [vmem:[%s114 + $0x438] sm:$0xff]
        %v276 = vld [vmem:[%s114 + $0x440] sm:$0xff]
        %v277 = vld [vmem:[%s114 + $0x448] sm:$0xff]
        %v278 = vld [vmem:[%s114 + $0x450] sm:$0xff]
        %v279 = vld [vmem:[%s114 + $0x458] sm:$0xff]
        %v280 = vld [vmem:[%s114 + $0x460] sm:$0xff]
        %v281 = vld [vmem:[%s114 + $0x468] sm:$0xff]
        %v282 = vld [vmem:[%s114 + $0x470] sm:$0xff]
        %v283 = vld [vmem:[%s114 + $0x478] sm:$0xff]
        %v284 = vld [vmem:[%s114 + $0x480] sm:$0xff]
        %v285 = vld [vmem:[%s114 + $0x488] sm:$0xff]
        %v286 = vld [vmem:[%s114 + $0x490] sm:$0xff]
        %v287 = vld [vmem:[%s114 + $0x498] sm:$0xff]
        %v288 = vld [vmem:[%s114 + $0x4a0] sm:$0xff]
        %v289 = vld [vmem:[%s114 + $0x4a8] sm:$0xff]
        %v290 = vld [vmem:[%s114 + $0x4b0] sm:$0xff]
        %v291 = vld [vmem:[%s114 + $0x4b8] sm:$0xff]
        %v292 = vld [vmem:[%s114 + $0x4c0] sm:$0xff]
        %v293 = vld [vmem:[%s114 + $0x4c8] sm:$0xff]
        %v294 = vld [vmem:[%s114 + $0x4d0] sm:$0xff]
        %v295 = vld [vmem:[%s114 + $0x4d8] sm:$0xff]
        %v296 = vld [vmem:[%s114 + $0x4e0] sm:$0xff]
        %v297 = vld [vmem:[%s114 + $0x4e8] sm:$0xff]
        %v298 = vld [vmem:[%s114 + $0x4f0] sm:$0xff]
        %v299 = vld [vmem:[%s114 + $0x4f8] sm:$0xff]
        %v300 = vld [vmem:[%s114 + $0x500] sm:$0xff]
        %v301 = vld [vmem:[%s114 + $0x508] sm:$0xff]
        %v302 = vld [vmem:[%s114 + $0x510] sm:$0xff]
        %v303 = vld [vmem:[%s114 + $0x518] sm:$0xff]
        %v304 = vld [vmem:[%s114 + $0x520] sm:$0xff]
        %v305 = vld [vmem:[%s114 + $0x528] sm:$0xff]
        %v306 = vld [vmem:[%s114 + $0x530] sm:$0xff]
        %v307 = vld [vmem:[%s114 + $0x538] sm:$0xff]
        %v308 = vld [vmem:[%s114 + $0x540] sm:$0xff]
        %v309 = vld [vmem:[%s114 + $0x548] sm:$0xff]
        %v310 = vld [vmem:[%s114 + $0x550] sm:$0xff]
        %v311 = vld [vmem:[%s114 + $0x558] sm:$0xff]
        %v312 = vld [vmem:[%s114 + $0x560] sm:$0xff]
        %v313 = vld [vmem:[%s114 + $0x568] sm:$0xff]
        %v314 = vld [vmem:[%s114 + $0x570] sm:$0xff]
        %v315 = vld [vmem:[%s114 + $0x578] sm:$0xff]
        %v316 = vld [vmem:[%s114 + $0x580] sm:$0xff]
        %v317 = vld [vmem:[%s114 + $0x588] sm:$0xff]
        %v318 = vld [vmem:[%s114 + $0x590] sm:$0xff]
        %v319 = vld [vmem:[%s114 + $0x598] sm:$0xff]
        %v320 = vld [vmem:[%s114 + $0x5a0] sm:$0xff]
        %v321 = vld [vmem:[%s114 + $0x5a8] sm:$0xff]
        %v322 = vld [vmem:[%s114 + $0x5b0] sm:$0xff]
        %v323 = vld [vmem:[%s114 + $0x5b8] sm:$0xff]
        %v324 = vld [vmem:[%s114 + $0x5c0] sm:$0xff]
        %v325 = vld [vmem:[%s114 + $0x5c8] sm:$0xff]
        %v326 = vld [vmem:[%s114 + $0x5d0] sm:$0xff]
        %v327 = vld [vmem:[%s114 + $0x5d8] sm:$0xff]
        %v328 = vld [vmem:[%s114 + $0x5e0] sm:$0xff]
        %v329 = vld [vmem:[%s114 + $0x5e8] sm:$0xff]
        %v330 = vld [vmem:[%s114 + $0x5f0] sm:$0xff]
        %v331 = vld [vmem:[%s114 + $0x5f8] sm:$0xff]
        %v332 = vld [vmem:[%s114 + $0x600] sm:$0xff]
        %v333 = vld [vmem:[%s114 + $0x608] sm:$0xff]
        %v334 = vld [vmem:[%s114 + $0x610] sm:$0xff]
        %v335 = vld [vmem:[%s114 + $0x618] sm:$0xff]
        %v336 = vld [vmem:[%s114 + $0x620] sm:$0xff]
        %v337 = vld [vmem:[%s114 + $0x628] sm:$0xff]
        %v338 = vld [vmem:[%s114 + $0x630] sm:$0xff]
        %v339 = vld [vmem:[%s114 + $0x638] sm:$0xff]
        %v340 = vld [vmem:[%s114 + $0x640] sm:$0xff]
        %v341 = vld [vmem:[%s114 + $0x648] sm:$0xff]
        %v342 = vld [vmem:[%s114 + $0x650] sm:$0xff]
        %v343 = vld [vmem:[%s114 + $0x658] sm:$0xff]
        %v344 = vld [vmem:[%s114 + $0x660] sm:$0xff]
        %v345 = vld [vmem:[%s114 + $0x668] sm:$0xff]
        %v346 = vld [vmem:[%s114 + $0x670] sm:$0xff]
        %v347 = vld [vmem:[%s114 + $0x678] sm:$0xff]
        %v348 = vld [vmem:[%s114 + $0x680] sm:$0xff]
        %v349 = vld [vmem:[%s114 + $0x688] sm:$0xff]
        %v350 = vld [vmem:[%s114 + $0x690] sm:$0xff]
        %v351 = vld [vmem:[%s114 + $0x698] sm:$0xff]
        %v352 = vld [vmem:[%s114 + $0x6a0] sm:$0xff]
        %v353 = vld [vmem:[%s114 + $0x6a8] sm:$0xff]
        %v354 = vld [vmem:[%s114 + $0x6b0] sm:$0xff]
        %v355 = vld [vmem:[%s114 + $0x6b8] sm:$0xff]
        %v356 = vld [vmem:[%s114 + $0x6c0] sm:$0xff]
        %v357 = vld [vmem:[%s114 + $0x6c8] sm:$0xff]
        %v358 = vld [vmem:[%s114 + $0x6d0] sm:$0xff]
        %v359 = vld [vmem:[%s114 + $0x6d8] sm:$0xff]
        %v360 = vld [vmem:[%s114 + $0x6e0] sm:$0xff]
        %v361 = vld [vmem:[%s114 + $0x6e8] sm:$0xff]
        %v362 = vld [vmem:[%s114 + $0x6f0] sm:$0xff]
        %v363 = vld [vmem:[%s114 + $0x6f8] sm:$0xff]
        %v364 = vld [vmem:[%s114 + $0x700] sm:$0xff]
        %v365 = vld [vmem:[%s114 + $0x708] sm:$0xff]
        %v366 = vld [vmem:[%s114 + $0x710] sm:$0xff]
        %v367 = vld [vmem:[%s114 + $0x718] sm:$0xff]
        %v368 = vld [vmem:[%s114 + $0x720] sm:$0xff]
        %v369 = vld [vmem:[%s114 + $0x728] sm:$0xff]
        %v370 = vld [vmem:[%s114 + $0x730] sm:$0xff]
        %v371 = vld [vmem:[%s114 + $0x738] sm:$0xff]
        %v372 = vld [vmem:[%s114 + $0x740] sm:$0xff]
        %v373 = vld [vmem:[%s114 + $0x748] sm:$0xff]
        %v374 = vld [vmem:[%s114 + $0x750] sm:$0xff]
        %v375 = vld [vmem:[%s114 + $0x758] sm:$0xff]
        %v376 = vld [vmem:[%s114 + $0x760] sm:$0xff]
        %v377 = vld [vmem:[%s114 + $0x768] sm:$0xff]
        %v378 = vld [vmem:[%s114 + $0x770] sm:$0xff]
        %v379 = vld [vmem:[%s114 + $0x778] sm:$0xff]
        %v380 = vld [vmem:[%s114 + $0x780] sm:$0xff]
        %v381 = vld [vmem:[%s114 + $0x788] sm:$0xff]
        %v382 = vld [vmem:[%s114 + $0x790] sm:$0xff]
        %v383 = vld [vmem:[%s114 + $0x798] sm:$0xff]
        %v384 = vld [vmem:[%s114 + $0x7a0] sm:$0xff]
        %v385 = vld [vmem:[%s114 + $0x7a8] sm:$0xff]
        %v386 = vld [vmem:[%s114 + $0x7b0] sm:$0xff]
        %v387 = vld [vmem:[%s114 + $0x7b8] sm:$0xff]
        %v388 = vld [vmem:[%s114 + $0x7c0] sm:$0xff]
        %v389 = vld [vmem:[%s114 + $0x7c8] sm:$0xff]
        %v390 = vld [vmem:[%s114 + $0x7d0] sm:$0xff]
        %v391 = vld [vmem:[%s114 + $0x7d8] sm:$0xff]
        %v392 = vld [vmem:[%s114 + $0x7e0] sm:$0xff]
        %v393 = vld [vmem:[%s114 + $0x7e8] sm:$0xff]
        %v394 = vld [vmem:[%s114 + $0x7f0] sm:$0xff]
        %v395 = vld [vmem:[%s114 + $0x7f8] sm:$0xff]
        %v396 = vunpack.c.l.bf16 %v140
        %v397 = vunpack.c.h.bf16 %v140
        %v398 = vunpack.c.l.bf16 %v141
        %v399 = vunpack.c.h.bf16 %v141
        %v400 = vunpack.c.l.bf16 %v142
        %v401 = vunpack.c.h.bf16 %v142
        %v402 = vunpack.c.l.bf16 %v143
        %v403 = vunpack.c.h.bf16 %v143
        %v404 = vunpack.c.l.bf16 %v144
        %v405 = vunpack.c.h.bf16 %v144
        %v406 = vunpack.c.l.bf16 %v145
        %v407 = vunpack.c.h.bf16 %v145
        %v408 = vunpack.c.l.bf16 %v146
        %v409 = vunpack.c.h.bf16 %v146
        %v410 = vunpack.c.l.bf16 %v147
        %v411 = vunpack.c.h.bf16 %v147
        %v412 = vunpack.c.l.bf16 %v148
        %v413 = vunpack.c.h.bf16 %v148
        %v414 = vunpack.c.l.bf16 %v149
        %v415 = vunpack.c.h.bf16 %v149
        %v416 = vunpack.c.l.bf16 %v150
        %v417 = vunpack.c.h.bf16 %v150
        %v418 = vunpack.c.l.bf16 %v151
        %v419 = vunpack.c.h.bf16 %v151
        %v420 = vunpack.c.l.bf16 %v152
        %v421 = vunpack.c.h.bf16 %v152
        %v422 = vunpack.c.l.bf16 %v153
        %v423 = vunpack.c.h.bf16 %v153
        %v424 = vunpack.c.l.bf16 %v154
        %v425 = vunpack.c.h.bf16 %v154
        %v426 = vunpack.c.l.bf16 %v155
        %v427 = vunpack.c.h.bf16 %v155
        %v428 = vunpack.c.l.bf16 %v156
        %v429 = vunpack.c.h.bf16 %v156
        %v430 = vunpack.c.l.bf16 %v157
        %v431 = vunpack.c.h.bf16 %v157
        %v432 = vunpack.c.l.bf16 %v158
        %v433 = vunpack.c.h.bf16 %v158
        %v434 = vunpack.c.l.bf16 %v159
        %v435 = vunpack.c.h.bf16 %v159
        %v436 = vunpack.c.l.bf16 %v160
        %v437 = vunpack.c.h.bf16 %v160
        %v438 = vunpack.c.l.bf16 %v161
        %v439 = vunpack.c.h.bf16 %v161
        %v440 = vunpack.c.l.bf16 %v162
        %v441 = vunpack.c.h.bf16 %v162
        %v442 = vunpack.c.l.bf16 %v163
        %v443 = vunpack.c.h.bf16 %v163
        %v444 = vunpack.c.l.bf16 %v164
        %v445 = vunpack.c.h.bf16 %v164
        %v446 = vunpack.c.l.bf16 %v165
        %v447 = vunpack.c.h.bf16 %v165
        %v448 = vunpack.c.l.bf16 %v166
        %v449 = vunpack.c.h.bf16 %v166
        %v450 = vunpack.c.l.bf16 %v167
        %v451 = vunpack.c.h.bf16 %v167
        %v452 = vunpack.c.l.bf16 %v168
        %v453 = vunpack.c.h.bf16 %v168
        %v454 = vunpack.c.l.bf16 %v169
        %v455 = vunpack.c.h.bf16 %v169
        %v456 = vunpack.c.l.bf16 %v170
        %v457 = vunpack.c.h.bf16 %v170
        %v458 = vunpack.c.l.bf16 %v171
        %v459 = vunpack.c.h.bf16 %v171
        %v460 = vunpack.c.l.bf16 %v172
        %v461 = vunpack.c.h.bf16 %v172
        %v462 = vunpack.c.l.bf16 %v173
        %v463 = vunpack.c.h.bf16 %v173
        %v464 = vunpack.c.l.bf16 %v174
        %v465 = vunpack.c.h.bf16 %v174
        %v466 = vunpack.c.l.bf16 %v175
        %v467 = vunpack.c.h.bf16 %v175
        %v468 = vunpack.c.l.bf16 %v176
        %v469 = vunpack.c.h.bf16 %v176
        %v470 = vunpack.c.l.bf16 %v177
        %v471 = vunpack.c.h.bf16 %v177
        %v472 = vunpack.c.l.bf16 %v178
        %v473 = vunpack.c.h.bf16 %v178
        %v474 = vunpack.c.l.bf16 %v179
        %v475 = vunpack.c.h.bf16 %v179
        %v476 = vunpack.c.l.bf16 %v180
        %v477 = vunpack.c.h.bf16 %v180
        %v478 = vunpack.c.l.bf16 %v181
        %v479 = vunpack.c.h.bf16 %v181
        %v480 = vunpack.c.l.bf16 %v182
        %v481 = vunpack.c.h.bf16 %v182
        %v482 = vunpack.c.l.bf16 %v183
        %v483 = vunpack.c.h.bf16 %v183
        %v484 = vunpack.c.l.bf16 %v184
        %v485 = vunpack.c.h.bf16 %v184
        %v486 = vunpack.c.l.bf16 %v185
        %v487 = vunpack.c.h.bf16 %v185
        %v488 = vunpack.c.l.bf16 %v186
        %v489 = vunpack.c.h.bf16 %v186
        %v490 = vunpack.c.l.bf16 %v187
        %v491 = vunpack.c.h.bf16 %v187
        %v492 = vunpack.c.l.bf16 %v188
        %v493 = vunpack.c.h.bf16 %v188
        %v494 = vunpack.c.l.bf16 %v189
        %v495 = vunpack.c.h.bf16 %v189
        %v496 = vunpack.c.l.bf16 %v190
        %v497 = vunpack.c.h.bf16 %v190
        %v498 = vunpack.c.l.bf16 %v191
        %v499 = vunpack.c.h.bf16 %v191
        %v500 = vunpack.c.l.bf16 %v192
        %v501 = vunpack.c.h.bf16 %v192
        %v502 = vunpack.c.l.bf16 %v193
        %v503 = vunpack.c.h.bf16 %v193
        %v504 = vunpack.c.l.bf16 %v194
        %v505 = vunpack.c.h.bf16 %v194
        %v506 = vunpack.c.l.bf16 %v195
        %v507 = vunpack.c.h.bf16 %v195
        %v508 = vunpack.c.l.bf16 %v196
        %v509 = vunpack.c.h.bf16 %v196
        %v510 = vunpack.c.l.bf16 %v197
        %v511 = vunpack.c.h.bf16 %v197
        %v512 = vunpack.c.l.bf16 %v198
        %v513 = vunpack.c.h.bf16 %v198
        %v514 = vunpack.c.l.bf16 %v199
        %v515 = vunpack.c.h.bf16 %v199
        %v516 = vunpack.c.l.bf16 %v200
        %v517 = vunpack.c.h.bf16 %v200
        %v518 = vunpack.c.l.bf16 %v201
        %v519 = vunpack.c.h.bf16 %v201
        %v520 = vunpack.c.l.bf16 %v202
        %v521 = vunpack.c.h.bf16 %v202
        %v522 = vunpack.c.l.bf16 %v203
        %v523 = vunpack.c.h.bf16 %v203
        %v524 = vunpack.c.l.bf16 %v204
        %v525 = vunpack.c.h.bf16 %v204
        %v526 = vunpack.c.l.bf16 %v205
        %v527 = vunpack.c.h.bf16 %v205
        %v528 = vunpack.c.l.bf16 %v206
        %v529 = vunpack.c.h.bf16 %v206
        %v530 = vunpack.c.l.bf16 %v207
        %v531 = vunpack.c.h.bf16 %v207
        %v532 = vunpack.c.l.bf16 %v208
        %v533 = vunpack.c.h.bf16 %v208
        %v534 = vunpack.c.l.bf16 %v209
        %v535 = vunpack.c.h.bf16 %v209
        %v536 = vunpack.c.l.bf16 %v210
        %v537 = vunpack.c.h.bf16 %v210
        %v538 = vunpack.c.l.bf16 %v211
        %v539 = vunpack.c.h.bf16 %v211
        %v540 = vunpack.c.l.bf16 %v212
        %v541 = vunpack.c.h.bf16 %v212
        %v542 = vunpack.c.l.bf16 %v213
        %v543 = vunpack.c.h.bf16 %v213
        %v544 = vunpack.c.l.bf16 %v214
        %v545 = vunpack.c.h.bf16 %v214
        %v546 = vunpack.c.l.bf16 %v215
        %v547 = vunpack.c.h.bf16 %v215
        %v548 = vunpack.c.l.bf16 %v216
        %v549 = vunpack.c.h.bf16 %v216
        %v550 = vunpack.c.l.bf16 %v217
        %v551 = vunpack.c.h.bf16 %v217
        %v552 = vunpack.c.l.bf16 %v218
        %v553 = vunpack.c.h.bf16 %v218
        %v554 = vunpack.c.l.bf16 %v219
        %v555 = vunpack.c.h.bf16 %v219
        %v556 = vunpack.c.l.bf16 %v220
        %v557 = vunpack.c.h.bf16 %v220
        %v558 = vunpack.c.l.bf16 %v221
        %v559 = vunpack.c.h.bf16 %v221
        %v560 = vunpack.c.l.bf16 %v222
        %v561 = vunpack.c.h.bf16 %v222
        %v562 = vunpack.c.l.bf16 %v223
        %v563 = vunpack.c.h.bf16 %v223
        %v564 = vunpack.c.l.bf16 %v224
        %v565 = vunpack.c.h.bf16 %v224
        %v566 = vunpack.c.l.bf16 %v225
        %v567 = vunpack.c.h.bf16 %v225
        %v568 = vunpack.c.l.bf16 %v226
        %v569 = vunpack.c.h.bf16 %v226
        %v570 = vunpack.c.l.bf16 %v227
        %v571 = vunpack.c.h.bf16 %v227
        %v572 = vunpack.c.l.bf16 %v228
        %v573 = vunpack.c.h.bf16 %v228
        %v574 = vunpack.c.l.bf16 %v229
        %v575 = vunpack.c.h.bf16 %v229
        %v576 = vunpack.c.l.bf16 %v230
        %v577 = vunpack.c.h.bf16 %v230
        %v578 = vunpack.c.l.bf16 %v231
        %v579 = vunpack.c.h.bf16 %v231
        %v580 = vunpack.c.l.bf16 %v232
        %v581 = vunpack.c.h.bf16 %v232
        %v582 = vunpack.c.l.bf16 %v233
        %v583 = vunpack.c.h.bf16 %v233
        %v584 = vunpack.c.l.bf16 %v234
        %v585 = vunpack.c.h.bf16 %v234
        %v586 = vunpack.c.l.bf16 %v235
        %v587 = vunpack.c.h.bf16 %v235
        %v588 = vunpack.c.l.bf16 %v236
        %v589 = vunpack.c.h.bf16 %v236
        %v590 = vunpack.c.l.bf16 %v237
        %v591 = vunpack.c.h.bf16 %v237
        %v592 = vunpack.c.l.bf16 %v238
        %v593 = vunpack.c.h.bf16 %v238
        %v594 = vunpack.c.l.bf16 %v239
        %v595 = vunpack.c.h.bf16 %v239
        %v596 = vunpack.c.l.bf16 %v240
        %v597 = vunpack.c.h.bf16 %v240
        %v598 = vunpack.c.l.bf16 %v241
        %v599 = vunpack.c.h.bf16 %v241
        %v600 = vunpack.c.l.bf16 %v242
        %v601 = vunpack.c.h.bf16 %v242
        %v602 = vunpack.c.l.bf16 %v243
        %v603 = vunpack.c.h.bf16 %v243
        %v604 = vunpack.c.l.bf16 %v244
        %v605 = vunpack.c.h.bf16 %v244
        %v606 = vunpack.c.l.bf16 %v245
        %v607 = vunpack.c.h.bf16 %v245
        %v608 = vunpack.c.l.bf16 %v246
        %v609 = vunpack.c.h.bf16 %v246
        %v610 = vunpack.c.l.bf16 %v247
        %v611 = vunpack.c.h.bf16 %v247
        %v612 = vunpack.c.l.bf16 %v248
        %v613 = vunpack.c.h.bf16 %v248
        %v614 = vunpack.c.l.bf16 %v249
        %v615 = vunpack.c.h.bf16 %v249
        %v616 = vunpack.c.l.bf16 %v250
        %v617 = vunpack.c.h.bf16 %v250
        %v618 = vunpack.c.l.bf16 %v251
        %v619 = vunpack.c.h.bf16 %v251
        %v620 = vunpack.c.l.bf16 %v252
        %v621 = vunpack.c.h.bf16 %v252
        %v622 = vunpack.c.l.bf16 %v253
        %v623 = vunpack.c.h.bf16 %v253
        %v624 = vunpack.c.l.bf16 %v254
        %v625 = vunpack.c.h.bf16 %v254
        %v626 = vunpack.c.l.bf16 %v255
        %v627 = vunpack.c.h.bf16 %v255
        %v628 = vunpack.c.l.bf16 %v256
        %v629 = vunpack.c.h.bf16 %v256
        %v630 = vunpack.c.l.bf16 %v257
        %v631 = vunpack.c.h.bf16 %v257
        %v632 = vunpack.c.l.bf16 %v258
        %v633 = vunpack.c.h.bf16 %v258
        %v634 = vunpack.c.l.bf16 %v259
        %v635 = vunpack.c.h.bf16 %v259
        %v636 = vunpack.c.l.bf16 %v260
        %v637 = vunpack.c.h.bf16 %v260
        %v638 = vunpack.c.l.bf16 %v261
        %v639 = vunpack.c.h.bf16 %v261
        %v640 = vunpack.c.l.bf16 %v262
        %v641 = vunpack.c.h.bf16 %v262
        %v642 = vunpack.c.l.bf16 %v263
        %v643 = vunpack.c.h.bf16 %v263
        %v644 = vunpack.c.l.bf16 %v264
        %v645 = vunpack.c.h.bf16 %v264
        %v646 = vunpack.c.l.bf16 %v265
        %v647 = vunpack.c.h.bf16 %v265
        %v648 = vunpack.c.l.bf16 %v266
        %v649 = vunpack.c.h.bf16 %v266
        %v650 = vunpack.c.l.bf16 %v267
        %v651 = vunpack.c.h.bf16 %v267
        %v652 = vunpack.c.l.bf16 %v268
        %v653 = vunpack.c.h.bf16 %v268
        %v654 = vunpack.c.l.bf16 %v269
        %v655 = vunpack.c.h.bf16 %v269
        %v656 = vunpack.c.l.bf16 %v270
        %v657 = vunpack.c.h.bf16 %v270
        %v658 = vunpack.c.l.bf16 %v271
        %v659 = vunpack.c.h.bf16 %v271
        %v660 = vunpack.c.l.bf16 %v272
        %v661 = vunpack.c.h.bf16 %v272
        %v662 = vunpack.c.l.bf16 %v273
        %v663 = vunpack.c.h.bf16 %v273
        %v664 = vunpack.c.l.bf16 %v274
        %v665 = vunpack.c.h.bf16 %v274
        %v666 = vunpack.c.l.bf16 %v275
        %v667 = vunpack.c.h.bf16 %v275
        %v668 = vunpack.c.l.bf16 %v276
        %v669 = vunpack.c.h.bf16 %v276
        %v670 = vunpack.c.l.bf16 %v277
        %v671 = vunpack.c.h.bf16 %v277
        %v672 = vunpack.c.l.bf16 %v278
        %v673 = vunpack.c.h.bf16 %v278
        %v674 = vunpack.c.l.bf16 %v279
        %v675 = vunpack.c.h.bf16 %v279
        %v676 = vunpack.c.l.bf16 %v280
        %v677 = vunpack.c.h.bf16 %v280
        %v678 = vunpack.c.l.bf16 %v281
        %v679 = vunpack.c.h.bf16 %v281
        %v680 = vunpack.c.l.bf16 %v282
        %v681 = vunpack.c.h.bf16 %v282
        %v682 = vunpack.c.l.bf16 %v283
        %v683 = vunpack.c.h.bf16 %v283
        %v684 = vunpack.c.l.bf16 %v284
        %v685 = vunpack.c.h.bf16 %v284
        %v686 = vunpack.c.l.bf16 %v285
        %v687 = vunpack.c.h.bf16 %v285
        %v688 = vunpack.c.l.bf16 %v286
        %v689 = vunpack.c.h.bf16 %v286
        %v690 = vunpack.c.l.bf16 %v287
        %v691 = vunpack.c.h.bf16 %v287
        %v692 = vunpack.c.l.bf16 %v288
        %v693 = vunpack.c.h.bf16 %v288
        %v694 = vunpack.c.l.bf16 %v289
        %v695 = vunpack.c.h.bf16 %v289
        %v696 = vunpack.c.l.bf16 %v290
        %v697 = vunpack.c.h.bf16 %v290
        %v698 = vunpack.c.l.bf16 %v291
        %v699 = vunpack.c.h.bf16 %v291
        %v700 = vunpack.c.l.bf16 %v292
        %v701 = vunpack.c.h.bf16 %v292
        %v702 = vunpack.c.l.bf16 %v293
        %v703 = vunpack.c.h.bf16 %v293
        %v704 = vunpack.c.l.bf16 %v294
        %v705 = vunpack.c.h.bf16 %v294
        %v706 = vunpack.c.l.bf16 %v295
        %v707 = vunpack.c.h.bf16 %v295
        %v708 = vunpack.c.l.bf16 %v296
        %v709 = vunpack.c.h.bf16 %v296
        %v710 = vunpack.c.l.bf16 %v297
        %v711 = vunpack.c.h.bf16 %v297
        %v712 = vunpack.c.l.bf16 %v298
        %v713 = vunpack.c.h.bf16 %v298
        %v714 = vunpack.c.l.bf16 %v299
        %v715 = vunpack.c.h.bf16 %v299
        %v716 = vunpack.c.l.bf16 %v300
        %v717 = vunpack.c.h.bf16 %v300
        %v718 = vunpack.c.l.bf16 %v301
        %v719 = vunpack.c.h.bf16 %v301
        %v720 = vunpack.c.l.bf16 %v302
        %v721 = vunpack.c.h.bf16 %v302
        %v722 = vunpack.c.l.bf16 %v303
        %v723 = vunpack.c.h.bf16 %v303
        %v724 = vunpack.c.l.bf16 %v304
        %v725 = vunpack.c.h.bf16 %v304
        %v726 = vunpack.c.l.bf16 %v305
        %v727 = vunpack.c.h.bf16 %v305
        %v728 = vunpack.c.l.bf16 %v306
        %v729 = vunpack.c.h.bf16 %v306
        %v730 = vunpack.c.l.bf16 %v307
        %v731 = vunpack.c.h.bf16 %v307
        %v732 = vunpack.c.l.bf16 %v308
        %v733 = vunpack.c.h.bf16 %v308
        %v734 = vunpack.c.l.bf16 %v309
        %v735 = vunpack.c.h.bf16 %v309
        %v736 = vunpack.c.l.bf16 %v310
        %v737 = vunpack.c.h.bf16 %v310
        %v738 = vunpack.c.l.bf16 %v311
        %v739 = vunpack.c.h.bf16 %v311
        %v740 = vunpack.c.l.bf16 %v312
        %v741 = vunpack.c.h.bf16 %v312
        %v742 = vunpack.c.l.bf16 %v313
        %v743 = vunpack.c.h.bf16 %v313
        %v744 = vunpack.c.l.bf16 %v314
        %v745 = vunpack.c.h.bf16 %v314
        %v746 = vunpack.c.l.bf16 %v315
        %v747 = vunpack.c.h.bf16 %v315
        %v748 = vunpack.c.l.bf16 %v316
        %v749 = vunpack.c.h.bf16 %v316
        %v750 = vunpack.c.l.bf16 %v317
        %v751 = vunpack.c.h.bf16 %v317
        %v752 = vunpack.c.l.bf16 %v318
        %v753 = vunpack.c.h.bf16 %v318
        %v754 = vunpack.c.l.bf16 %v319
        %v755 = vunpack.c.h.bf16 %v319
        %v756 = vunpack.c.l.bf16 %v320
        %v757 = vunpack.c.h.bf16 %v320
        %v758 = vunpack.c.l.bf16 %v321
        %v759 = vunpack.c.h.bf16 %v321
        %v760 = vunpack.c.l.bf16 %v322
        %v761 = vunpack.c.h.bf16 %v322
        %v762 = vunpack.c.l.bf16 %v323
        %v763 = vunpack.c.h.bf16 %v323
        %v764 = vunpack.c.l.bf16 %v324
        %v765 = vunpack.c.h.bf16 %v324
        %v766 = vunpack.c.l.bf16 %v325
        %v767 = vunpack.c.h.bf16 %v325
        %v768 = vunpack.c.l.bf16 %v326
        %v769 = vunpack.c.h.bf16 %v326
        %v770 = vunpack.c.l.bf16 %v327
        %v771 = vunpack.c.h.bf16 %v327
        %v772 = vunpack.c.l.bf16 %v328
        %v773 = vunpack.c.h.bf16 %v328
        %v774 = vunpack.c.l.bf16 %v329
        %v775 = vunpack.c.h.bf16 %v329
        %v776 = vunpack.c.l.bf16 %v330
        %v777 = vunpack.c.h.bf16 %v330
        %v778 = vunpack.c.l.bf16 %v331
        %v779 = vunpack.c.h.bf16 %v331
        %v780 = vunpack.c.l.bf16 %v332
        %v781 = vunpack.c.h.bf16 %v332
        %v782 = vunpack.c.l.bf16 %v333
        %v783 = vunpack.c.h.bf16 %v333
        %v784 = vunpack.c.l.bf16 %v334
        %v785 = vunpack.c.h.bf16 %v334
        %v786 = vunpack.c.l.bf16 %v335
        %v787 = vunpack.c.h.bf16 %v335
        %v788 = vunpack.c.l.bf16 %v336
        %v789 = vunpack.c.h.bf16 %v336
        %v790 = vunpack.c.l.bf16 %v337
        %v791 = vunpack.c.h.bf16 %v337
        %v792 = vunpack.c.l.bf16 %v338
        %v793 = vunpack.c.h.bf16 %v338
        %v794 = vunpack.c.l.bf16 %v339
        %v795 = vunpack.c.h.bf16 %v339
        %v796 = vunpack.c.l.bf16 %v340
        %v797 = vunpack.c.h.bf16 %v340
        %v798 = vunpack.c.l.bf16 %v341
        %v799 = vunpack.c.h.bf16 %v341
        %v800 = vunpack.c.l.bf16 %v342
        %v801 = vunpack.c.h.bf16 %v342
        %v802 = vunpack.c.l.bf16 %v343
        %v803 = vunpack.c.h.bf16 %v343
        %v804 = vunpack.c.l.bf16 %v344
        %v805 = vunpack.c.h.bf16 %v344
        %v806 = vunpack.c.l.bf16 %v345
        %v807 = vunpack.c.h.bf16 %v345
        %v808 = vunpack.c.l.bf16 %v346
        %v809 = vunpack.c.h.bf16 %v346
        %v810 = vunpack.c.l.bf16 %v347
        %v811 = vunpack.c.h.bf16 %v347
        %v812 = vunpack.c.l.bf16 %v348
        %v813 = vunpack.c.h.bf16 %v348
        %v814 = vunpack.c.l.bf16 %v349
        %v815 = vunpack.c.h.bf16 %v349
        %v816 = vunpack.c.l.bf16 %v350
        %v817 = vunpack.c.h.bf16 %v350
        %v818 = vunpack.c.l.bf16 %v351
        %v819 = vunpack.c.h.bf16 %v351
        %v820 = vunpack.c.l.bf16 %v352
        %v821 = vunpack.c.h.bf16 %v352
        %v822 = vunpack.c.l.bf16 %v353
        %v823 = vunpack.c.h.bf16 %v353
        %v824 = vunpack.c.l.bf16 %v354
        %v825 = vunpack.c.h.bf16 %v354
        %v826 = vunpack.c.l.bf16 %v355
        %v827 = vunpack.c.h.bf16 %v355
        %v828 = vunpack.c.l.bf16 %v356
        %v829 = vunpack.c.h.bf16 %v356
        %v830 = vunpack.c.l.bf16 %v357
        %v831 = vunpack.c.h.bf16 %v357
        %v832 = vunpack.c.l.bf16 %v358
        %v833 = vunpack.c.h.bf16 %v358
        %v834 = vunpack.c.l.bf16 %v359
        %v835 = vunpack.c.h.bf16 %v359
        %v836 = vunpack.c.l.bf16 %v360
        %v837 = vunpack.c.h.bf16 %v360
        %v838 = vunpack.c.l.bf16 %v361
        %v839 = vunpack.c.h.bf16 %v361
        %v840 = vunpack.c.l.bf16 %v362
        %v841 = vunpack.c.h.bf16 %v362
        %v842 = vunpack.c.l.bf16 %v363
        %v843 = vunpack.c.h.bf16 %v363
        %v844 = vunpack.c.l.bf16 %v364
        %v845 = vunpack.c.h.bf16 %v364
        %v846 = vunpack.c.l.bf16 %v365
        %v847 = vunpack.c.h.bf16 %v365
        %v848 = vunpack.c.l.bf16 %v366
        %v849 = vunpack.c.h.bf16 %v366
        %v850 = vunpack.c.l.bf16 %v367
        %v851 = vunpack.c.h.bf16 %v367
        %v852 = vunpack.c.l.bf16 %v368
        %v853 = vunpack.c.h.bf16 %v368
        %v854 = vunpack.c.l.bf16 %v369
        %v855 = vunpack.c.h.bf16 %v369
        %v856 = vunpack.c.l.bf16 %v370
        %v857 = vunpack.c.h.bf16 %v370
        %v858 = vunpack.c.l.bf16 %v371
        %v859 = vunpack.c.h.bf16 %v371
        %v860 = vunpack.c.l.bf16 %v372
        %v861 = vunpack.c.h.bf16 %v372
        %v862 = vunpack.c.l.bf16 %v373
        %v863 = vunpack.c.h.bf16 %v373
        %v864 = vunpack.c.l.bf16 %v374
        %v865 = vunpack.c.h.bf16 %v374
        %v866 = vunpack.c.l.bf16 %v375
        %v867 = vunpack.c.h.bf16 %v375
        %v868 = vunpack.c.l.bf16 %v376
        %v869 = vunpack.c.h.bf16 %v376
        %v870 = vunpack.c.l.bf16 %v377
        %v871 = vunpack.c.h.bf16 %v377
        %v872 = vunpack.c.l.bf16 %v378
        %v873 = vunpack.c.h.bf16 %v378
        %v874 = vunpack.c.l.bf16 %v379
        %v875 = vunpack.c.h.bf16 %v379
        %v876 = vunpack.c.l.bf16 %v380
        %v877 = vunpack.c.h.bf16 %v380
        %v878 = vunpack.c.l.bf16 %v381
        %v879 = vunpack.c.h.bf16 %v381
        %v880 = vunpack.c.l.bf16 %v382
        %v881 = vunpack.c.h.bf16 %v382
        %v882 = vunpack.c.l.bf16 %v383
        %v883 = vunpack.c.h.bf16 %v383
        %v884 = vunpack.c.l.bf16 %v384
        %v885 = vunpack.c.h.bf16 %v384
        %v886 = vunpack.c.l.bf16 %v385
        %v887 = vunpack.c.h.bf16 %v385
        %v888 = vunpack.c.l.bf16 %v386
        %v889 = vunpack.c.h.bf16 %v386
        %v890 = vunpack.c.l.bf16 %v387
        %v891 = vunpack.c.h.bf16 %v387
        %v892 = vunpack.c.l.bf16 %v388
        %v893 = vunpack.c.h.bf16 %v388
        %v894 = vunpack.c.l.bf16 %v389
        %v895 = vunpack.c.h.bf16 %v389
        %v896 = vunpack.c.l.bf16 %v390
        %v897 = vunpack.c.h.bf16 %v390
        %v898 = vunpack.c.l.bf16 %v391
        %v899 = vunpack.c.h.bf16 %v391
        %v900 = vunpack.c.l.bf16 %v392
        %v901 = vunpack.c.h.bf16 %v392
        %v902 = vunpack.c.l.bf16 %v393
        %v903 = vunpack.c.h.bf16 %v393
        %v904 = vunpack.c.l.bf16 %v394
        %v905 = vunpack.c.h.bf16 %v394
        %v906 = vunpack.c.l.bf16 %v395
        %v907 = vunpack.c.h.bf16 %v395
        %v908 = vadd.f32 %v396, %v397
        %v909 = vadd.f32 %v908, %v398
        %v910 = vadd.f32 %v909, %v399
        %v911 = vadd.f32 %v910, %v400
        %v912 = vadd.f32 %v911, %v401
        %v913 = vadd.f32 %v912, %v402
        %v914 = vadd.f32 %v913, %v403
        %915 = vadd.xlane.f32.xlu0 %v914
        %v916 = vpop.xlane.xlu0 %915
        %v917 = vadd.f32 %v404, %v405
        %v918 = vadd.f32 %v917, %v406
        %v919 = vadd.f32 %v918, %v407
        %v920 = vadd.f32 %v919, %v408
        %v921 = vadd.f32 %v920, %v409
        %v922 = vadd.f32 %v921, %v410
        %v923 = vadd.f32 %v922, %v411
        %924 = vadd.xlane.f32.xlu0 %v923
        %v925 = vpop.xlane.xlu0 %924
        %v926 = vadd.f32 %v412, %v413
        %v927 = vadd.f32 %v926, %v414
        %v928 = vadd.f32 %v927, %v415
        %v929 = vadd.f32 %v928, %v416
        %v930 = vadd.f32 %v929, %v417
        %v931 = vadd.f32 %v930, %v418
        %v932 = vadd.f32 %v931, %v419
        %933 = vadd.xlane.f32.xlu0 %v932
        %v934 = vpop.xlane.xlu0 %933
        %v935 = vadd.f32 %v420, %v421
        %v936 = vadd.f32 %v935, %v422
        %v937 = vadd.f32 %v936, %v423
        %v938 = vadd.f32 %v937, %v424
        %v939 = vadd.f32 %v938, %v425
        %v940 = vadd.f32 %v939, %v426
        %v941 = vadd.f32 %v940, %v427
        %942 = vadd.xlane.f32.xlu0 %v941
        %v943 = vpop.xlane.xlu0 %942
        %v944 = vadd.f32 %v428, %v429
        %v945 = vadd.f32 %v944, %v430
        %v946 = vadd.f32 %v945, %v431
        %v947 = vadd.f32 %v946, %v432
        %v948 = vadd.f32 %v947, %v433
        %v949 = vadd.f32 %v948, %v434
        %v950 = vadd.f32 %v949, %v435
        %951 = vadd.xlane.f32.xlu0 %v950
        %v952 = vpop.xlane.xlu0 %951
        %v953 = vadd.f32 %v436, %v437
        %v954 = vadd.f32 %v953, %v438
        %v955 = vadd.f32 %v954, %v439
        %v956 = vadd.f32 %v955, %v440
        %v957 = vadd.f32 %v956, %v441
        %v958 = vadd.f32 %v957, %v442
        %v959 = vadd.f32 %v958, %v443
        %960 = vadd.xlane.f32.xlu0 %v959
        %v961 = vpop.xlane.xlu0 %960
        %v962 = vadd.f32 %v444, %v445
        %v963 = vadd.f32 %v962, %v446
        %v964 = vadd.f32 %v963, %v447
        %v965 = vadd.f32 %v964, %v448
        %v966 = vadd.f32 %v965, %v449
        %v967 = vadd.f32 %v966, %v450
        %v968 = vadd.f32 %v967, %v451
        %969 = vadd.xlane.f32.xlu0 %v968
        %v970 = vpop.xlane.xlu0 %969
        %v971 = vadd.f32 %v452, %v453
        %v972 = vadd.f32 %v971, %v454
        %v973 = vadd.f32 %v972, %v455
        %v974 = vadd.f32 %v973, %v456
        %v975 = vadd.f32 %v974, %v457
        %v976 = vadd.f32 %v975, %v458
        %v977 = vadd.f32 %v976, %v459
        %978 = vadd.xlane.f32.xlu0 %v977
        %v979 = vpop.xlane.xlu0 %978
        %v980 = vadd.f32 %v460, %v461
        %v981 = vadd.f32 %v980, %v462
        %v982 = vadd.f32 %v981, %v463
        %v983 = vadd.f32 %v982, %v464
        %v984 = vadd.f32 %v983, %v465
        %v985 = vadd.f32 %v984, %v466
        %v986 = vadd.f32 %v985, %v467
        %987 = vadd.xlane.f32.xlu0 %v986
        %v988 = vpop.xlane.xlu0 %987
        %v989 = vadd.f32 %v468, %v469
        %v990 = vadd.f32 %v989, %v470
        %v991 = vadd.f32 %v990, %v471
        %v992 = vadd.f32 %v991, %v472
        %v993 = vadd.f32 %v992, %v473
        %v994 = vadd.f32 %v993, %v474
        %v995 = vadd.f32 %v994, %v475
        %996 = vadd.xlane.f32.xlu0 %v995
        %v997 = vpop.xlane.xlu0 %996
        %v998 = vadd.f32 %v476, %v477
        %v999 = vadd.f32 %v998, %v478
        %v1000 = vadd.f32 %v999, %v479
        %v1001 = vadd.f32 %v1000, %v480
        %v1002 = vadd.f32 %v1001, %v481
        %v1003 = vadd.f32 %v1002, %v482
        %v1004 = vadd.f32 %v1003, %v483
        %1005 = vadd.xlane.f32.xlu0 %v1004
        %v1006 = vpop.xlane.xlu0 %1005
        %v1007 = vadd.f32 %v484, %v485
        %v1008 = vadd.f32 %v1007, %v486
        %v1009 = vadd.f32 %v1008, %v487
        %v1010 = vadd.f32 %v1009, %v488
        %v1011 = vadd.f32 %v1010, %v489
        %v1012 = vadd.f32 %v1011, %v490
        %v1013 = vadd.f32 %v1012, %v491
        %1014 = vadd.xlane.f32.xlu0 %v1013
        %v1015 = vpop.xlane.xlu0 %1014
        %v1016 = vadd.f32 %v492, %v493
        %v1017 = vadd.f32 %v1016, %v494
        %v1018 = vadd.f32 %v1017, %v495
        %v1019 = vadd.f32 %v1018, %v496
        %v1020 = vadd.f32 %v1019, %v497
        %v1021 = vadd.f32 %v1020, %v498
        %v1022 = vadd.f32 %v1021, %v499
        %1023 = vadd.xlane.f32.xlu0 %v1022
        %v1024 = vpop.xlane.xlu0 %1023
        %v1025 = vadd.f32 %v500, %v501
        %v1026 = vadd.f32 %v1025, %v502
        %v1027 = vadd.f32 %v1026, %v503
        %v1028 = vadd.f32 %v1027, %v504
        %v1029 = vadd.f32 %v1028, %v505
        %v1030 = vadd.f32 %v1029, %v506
        %v1031 = vadd.f32 %v1030, %v507
        %1032 = vadd.xlane.f32.xlu0 %v1031
        %v1033 = vpop.xlane.xlu0 %1032
        %v1034 = vadd.f32 %v508, %v509
        %v1035 = vadd.f32 %v1034, %v510
        %v1036 = vadd.f32 %v1035, %v511
        %v1037 = vadd.f32 %v1036, %v512
        %v1038 = vadd.f32 %v1037, %v513
        %v1039 = vadd.f32 %v1038, %v514
        %v1040 = vadd.f32 %v1039, %v515
        %1041 = vadd.xlane.f32.xlu0 %v1040
        %v1042 = vpop.xlane.xlu0 %1041
        %v1043 = vadd.f32 %v516, %v517
        %v1044 = vadd.f32 %v1043, %v518
        %v1045 = vadd.f32 %v1044, %v519
        %v1046 = vadd.f32 %v1045, %v520
        %v1047 = vadd.f32 %v1046, %v521
        %v1048 = vadd.f32 %v1047, %v522
        %v1049 = vadd.f32 %v1048, %v523
        %1050 = vadd.xlane.f32.xlu0 %v1049
        %v1051 = vpop.xlane.xlu0 %1050
        %v1052 = vadd.f32 %v524, %v525
        %v1053 = vadd.f32 %v1052, %v526
        %v1054 = vadd.f32 %v1053, %v527
        %v1055 = vadd.f32 %v1054, %v528
        %v1056 = vadd.f32 %v1055, %v529
        %v1057 = vadd.f32 %v1056, %v530
        %v1058 = vadd.f32 %v1057, %v531
        %1059 = vadd.xlane.f32.xlu0 %v1058
        %v1060 = vpop.xlane.xlu0 %1059
        %v1061 = vadd.f32 %v532, %v533
        %v1062 = vadd.f32 %v1061, %v534
        %v1063 = vadd.f32 %v1062, %v535
        %v1064 = vadd.f32 %v1063, %v536
        %v1065 = vadd.f32 %v1064, %v537
        %v1066 = vadd.f32 %v1065, %v538
        %v1067 = vadd.f32 %v1066, %v539
        %1068 = vadd.xlane.f32.xlu0 %v1067
        %v1069 = vpop.xlane.xlu0 %1068
        %v1070 = vadd.f32 %v540, %v541
        %v1071 = vadd.f32 %v1070, %v542
        %v1072 = vadd.f32 %v1071, %v543
        %v1073 = vadd.f32 %v1072, %v544
        %v1074 = vadd.f32 %v1073, %v545
        %v1075 = vadd.f32 %v1074, %v546
        %v1076 = vadd.f32 %v1075, %v547
        %1077 = vadd.xlane.f32.xlu0 %v1076
        %v1078 = vpop.xlane.xlu0 %1077
        %v1079 = vadd.f32 %v548, %v549
        %v1080 = vadd.f32 %v1079, %v550
        %v1081 = vadd.f32 %v1080, %v551
        %v1082 = vadd.f32 %v1081, %v552
        %v1083 = vadd.f32 %v1082, %v553
        %v1084 = vadd.f32 %v1083, %v554
        %v1085 = vadd.f32 %v1084, %v555
        %1086 = vadd.xlane.f32.xlu0 %v1085
        %v1087 = vpop.xlane.xlu0 %1086
        %v1088 = vadd.f32 %v556, %v557
        %v1089 = vadd.f32 %v1088, %v558
        %v1090 = vadd.f32 %v1089, %v559
        %v1091 = vadd.f32 %v1090, %v560
        %v1092 = vadd.f32 %v1091, %v561
        %v1093 = vadd.f32 %v1092, %v562
        %v1094 = vadd.f32 %v1093, %v563
        %1095 = vadd.xlane.f32.xlu0 %v1094
        %v1096 = vpop.xlane.xlu0 %1095
        %v1097 = vadd.f32 %v564, %v565
        %v1098 = vadd.f32 %v1097, %v566
        %v1099 = vadd.f32 %v1098, %v567
        %v1100 = vadd.f32 %v1099, %v568
        %v1101 = vadd.f32 %v1100, %v569
        %v1102 = vadd.f32 %v1101, %v570
        %v1103 = vadd.f32 %v1102, %v571
        %1104 = vadd.xlane.f32.xlu0 %v1103
        %v1105 = vpop.xlane.xlu0 %1104
        %v1106 = vadd.f32 %v572, %v573
        %v1107 = vadd.f32 %v1106, %v574
        %v1108 = vadd.f32 %v1107, %v575
        %v1109 = vadd.f32 %v1108, %v576
        %v1110 = vadd.f32 %v1109, %v577
        %v1111 = vadd.f32 %v1110, %v578
        %v1112 = vadd.f32 %v1111, %v579
        %1113 = vadd.xlane.f32.xlu0 %v1112
        %v1114 = vpop.xlane.xlu0 %1113
        %v1115 = vadd.f32 %v580, %v581
        %v1116 = vadd.f32 %v1115, %v582
        %v1117 = vadd.f32 %v1116, %v583
        %v1118 = vadd.f32 %v1117, %v584
        %v1119 = vadd.f32 %v1118, %v585
        %v1120 = vadd.f32 %v1119, %v586
        %v1121 = vadd.f32 %v1120, %v587
        %1122 = vadd.xlane.f32.xlu0 %v1121
        %v1123 = vpop.xlane.xlu0 %1122
        %v1124 = vadd.f32 %v588, %v589
        %v1125 = vadd.f32 %v1124, %v590
        %v1126 = vadd.f32 %v1125, %v591
        %v1127 = vadd.f32 %v1126, %v592
        %v1128 = vadd.f32 %v1127, %v593
        %v1129 = vadd.f32 %v1128, %v594
        %v1130 = vadd.f32 %v1129, %v595
        %1131 = vadd.xlane.f32.xlu0 %v1130
        %v1132 = vpop.xlane.xlu0 %1131
        %v1133 = vadd.f32 %v596, %v597
        %v1134 = vadd.f32 %v1133, %v598
        %v1135 = vadd.f32 %v1134, %v599
        %v1136 = vadd.f32 %v1135, %v600
        %v1137 = vadd.f32 %v1136, %v601
        %v1138 = vadd.f32 %v1137, %v602
        %v1139 = vadd.f32 %v1138, %v603
        %1140 = vadd.xlane.f32.xlu0 %v1139
        %v1141 = vpop.xlane.xlu0 %1140
        %v1142 = vadd.f32 %v604, %v605
        %v1143 = vadd.f32 %v1142, %v606
        %v1144 = vadd.f32 %v1143, %v607
        %v1145 = vadd.f32 %v1144, %v608
        %v1146 = vadd.f32 %v1145, %v609
        %v1147 = vadd.f32 %v1146, %v610
        %v1148 = vadd.f32 %v1147, %v611
        %1149 = vadd.xlane.f32.xlu0 %v1148
        %v1150 = vpop.xlane.xlu0 %1149
        %v1151 = vadd.f32 %v612, %v613
        %v1152 = vadd.f32 %v1151, %v614
        %v1153 = vadd.f32 %v1152, %v615
        %v1154 = vadd.f32 %v1153, %v616
        %v1155 = vadd.f32 %v1154, %v617
        %v1156 = vadd.f32 %v1155, %v618
        %v1157 = vadd.f32 %v1156, %v619
        %1158 = vadd.xlane.f32.xlu0 %v1157
        %v1159 = vpop.xlane.xlu0 %1158
        %v1160 = vadd.f32 %v620, %v621
        %v1161 = vadd.f32 %v1160, %v622
        %v1162 = vadd.f32 %v1161, %v623
        %v1163 = vadd.f32 %v1162, %v624
        %v1164 = vadd.f32 %v1163, %v625
        %v1165 = vadd.f32 %v1164, %v626
        %v1166 = vadd.f32 %v1165, %v627
        %1167 = vadd.xlane.f32.xlu0 %v1166
        %v1168 = vpop.xlane.xlu0 %1167
        %v1169 = vadd.f32 %v628, %v629
        %v1170 = vadd.f32 %v1169, %v630
        %v1171 = vadd.f32 %v1170, %v631
        %v1172 = vadd.f32 %v1171, %v632
        %v1173 = vadd.f32 %v1172, %v633
        %v1174 = vadd.f32 %v1173, %v634
        %v1175 = vadd.f32 %v1174, %v635
        %1176 = vadd.xlane.f32.xlu0 %v1175
        %v1177 = vpop.xlane.xlu0 %1176
        %v1178 = vadd.f32 %v636, %v637
        %v1179 = vadd.f32 %v1178, %v638
        %v1180 = vadd.f32 %v1179, %v639
        %v1181 = vadd.f32 %v1180, %v640
        %v1182 = vadd.f32 %v1181, %v641
        %v1183 = vadd.f32 %v1182, %v642
        %v1184 = vadd.f32 %v1183, %v643
        %1185 = vadd.xlane.f32.xlu0 %v1184
        %v1186 = vpop.xlane.xlu0 %1185
        %v1187 = vadd.f32 %v644, %v645
        %v1188 = vadd.f32 %v1187, %v646
        %v1189 = vadd.f32 %v1188, %v647
        %v1190 = vadd.f32 %v1189, %v648
        %v1191 = vadd.f32 %v1190, %v649
        %v1192 = vadd.f32 %v1191, %v650
        %v1193 = vadd.f32 %v1192, %v651
        %1194 = vadd.xlane.f32.xlu0 %v1193
        %v1195 = vpop.xlane.xlu0 %1194
        %v1196 = vadd.f32 %v652, %v653
        %v1197 = vadd.f32 %v1196, %v654
        %v1198 = vadd.f32 %v1197, %v655
        %v1199 = vadd.f32 %v1198, %v656
        %v1200 = vadd.f32 %v1199, %v657
        %v1201 = vadd.f32 %v1200, %v658
        %v1202 = vadd.f32 %v1201, %v659
        %1203 = vadd.xlane.f32.xlu0 %v1202
        %v1204 = vpop.xlane.xlu0 %1203
        %v1205 = vadd.f32 %v660, %v661
        %v1206 = vadd.f32 %v1205, %v662
        %v1207 = vadd.f32 %v1206, %v663
        %v1208 = vadd.f32 %v1207, %v664
        %v1209 = vadd.f32 %v1208, %v665
        %v1210 = vadd.f32 %v1209, %v666
        %v1211 = vadd.f32 %v1210, %v667
        %1212 = vadd.xlane.f32.xlu0 %v1211
        %v1213 = vpop.xlane.xlu0 %1212
        %v1214 = vadd.f32 %v668, %v669
        %v1215 = vadd.f32 %v1214, %v670
        %v1216 = vadd.f32 %v1215, %v671
        %v1217 = vadd.f32 %v1216, %v672
        %v1218 = vadd.f32 %v1217, %v673
        %v1219 = vadd.f32 %v1218, %v674
        %v1220 = vadd.f32 %v1219, %v675
        %1221 = vadd.xlane.f32.xlu0 %v1220
        %v1222 = vpop.xlane.xlu0 %1221
        %v1223 = vadd.f32 %v676, %v677
        %v1224 = vadd.f32 %v1223, %v678
        %v1225 = vadd.f32 %v1224, %v679
        %v1226 = vadd.f32 %v1225, %v680
        %v1227 = vadd.f32 %v1226, %v681
        %v1228 = vadd.f32 %v1227, %v682
        %v1229 = vadd.f32 %v1228, %v683
        %1230 = vadd.xlane.f32.xlu0 %v1229
        %v1231 = vpop.xlane.xlu0 %1230
        %v1232 = vadd.f32 %v684, %v685
        %v1233 = vadd.f32 %v1232, %v686
        %v1234 = vadd.f32 %v1233, %v687
        %v1235 = vadd.f32 %v1234, %v688
        %v1236 = vadd.f32 %v1235, %v689
        %v1237 = vadd.f32 %v1236, %v690
        %v1238 = vadd.f32 %v1237, %v691
        %1239 = vadd.xlane.f32.xlu0 %v1238
        %v1240 = vpop.xlane.xlu0 %1239
        %v1241 = vadd.f32 %v692, %v693
        %v1242 = vadd.f32 %v1241, %v694
        %v1243 = vadd.f32 %v1242, %v695
        %v1244 = vadd.f32 %v1243, %v696
        %v1245 = vadd.f32 %v1244, %v697
        %v1246 = vadd.f32 %v1245, %v698
        %v1247 = vadd.f32 %v1246, %v699
        %1248 = vadd.xlane.f32.xlu0 %v1247
        %v1249 = vpop.xlane.xlu0 %1248
        %v1250 = vadd.f32 %v700, %v701
        %v1251 = vadd.f32 %v1250, %v702
        %v1252 = vadd.f32 %v1251, %v703
        %v1253 = vadd.f32 %v1252, %v704
        %v1254 = vadd.f32 %v1253, %v705
        %v1255 = vadd.f32 %v1254, %v706
        %v1256 = vadd.f32 %v1255, %v707
        %1257 = vadd.xlane.f32.xlu0 %v1256
        %v1258 = vpop.xlane.xlu0 %1257
        %v1259 = vadd.f32 %v708, %v709
        %v1260 = vadd.f32 %v1259, %v710
        %v1261 = vadd.f32 %v1260, %v711
        %v1262 = vadd.f32 %v1261, %v712
        %v1263 = vadd.f32 %v1262, %v713
        %v1264 = vadd.f32 %v1263, %v714
        %v1265 = vadd.f32 %v1264, %v715
        %1266 = vadd.xlane.f32.xlu0 %v1265
        %v1267 = vpop.xlane.xlu0 %1266
        %v1268 = vadd.f32 %v716, %v717
        %v1269 = vadd.f32 %v1268, %v718
        %v1270 = vadd.f32 %v1269, %v719
        %v1271 = vadd.f32 %v1270, %v720
        %v1272 = vadd.f32 %v1271, %v721
        %v1273 = vadd.f32 %v1272, %v722
        %v1274 = vadd.f32 %v1273, %v723
        %1275 = vadd.xlane.f32.xlu0 %v1274
        %v1276 = vpop.xlane.xlu0 %1275
        %v1277 = vadd.f32 %v724, %v725
        %v1278 = vadd.f32 %v1277, %v726
        %v1279 = vadd.f32 %v1278, %v727
        %v1280 = vadd.f32 %v1279, %v728
        %v1281 = vadd.f32 %v1280, %v729
        %v1282 = vadd.f32 %v1281, %v730
        %v1283 = vadd.f32 %v1282, %v731
        %1284 = vadd.xlane.f32.xlu0 %v1283
        %v1285 = vpop.xlane.xlu0 %1284
        %v1286 = vadd.f32 %v732, %v733
        %v1287 = vadd.f32 %v1286, %v734
        %v1288 = vadd.f32 %v1287, %v735
        %v1289 = vadd.f32 %v1288, %v736
        %v1290 = vadd.f32 %v1289, %v737
        %v1291 = vadd.f32 %v1290, %v738
        %v1292 = vadd.f32 %v1291, %v739
        %1293 = vadd.xlane.f32.xlu0 %v1292
        %v1294 = vpop.xlane.xlu0 %1293
        %v1295 = vadd.f32 %v740, %v741
        %v1296 = vadd.f32 %v1295, %v742
        %v1297 = vadd.f32 %v1296, %v743
        %v1298 = vadd.f32 %v1297, %v744
        %v1299 = vadd.f32 %v1298, %v745
        %v1300 = vadd.f32 %v1299, %v746
        %v1301 = vadd.f32 %v1300, %v747
        %1302 = vadd.xlane.f32.xlu0 %v1301
        %v1303 = vpop.xlane.xlu0 %1302
        %v1304 = vadd.f32 %v748, %v749
        %v1305 = vadd.f32 %v1304, %v750
        %v1306 = vadd.f32 %v1305, %v751
        %v1307 = vadd.f32 %v1306, %v752
        %v1308 = vadd.f32 %v1307, %v753
        %v1309 = vadd.f32 %v1308, %v754
        %v1310 = vadd.f32 %v1309, %v755
        %1311 = vadd.xlane.f32.xlu0 %v1310
        %v1312 = vpop.xlane.xlu0 %1311
        %v1313 = vadd.f32 %v756, %v757
        %v1314 = vadd.f32 %v1313, %v758
        %v1315 = vadd.f32 %v1314, %v759
        %v1316 = vadd.f32 %v1315, %v760
        %v1317 = vadd.f32 %v1316, %v761
        %v1318 = vadd.f32 %v1317, %v762
        %v1319 = vadd.f32 %v1318, %v763
        %1320 = vadd.xlane.f32.xlu0 %v1319
        %v1321 = vpop.xlane.xlu0 %1320
        %v1322 = vadd.f32 %v764, %v765
        %v1323 = vadd.f32 %v1322, %v766
        %v1324 = vadd.f32 %v1323, %v767
        %v1325 = vadd.f32 %v1324, %v768
        %v1326 = vadd.f32 %v1325, %v769
        %v1327 = vadd.f32 %v1326, %v770
        %v1328 = vadd.f32 %v1327, %v771
        %1329 = vadd.xlane.f32.xlu0 %v1328
        %v1330 = vpop.xlane.xlu0 %1329
        %v1331 = vadd.f32 %v772, %v773
        %v1332 = vadd.f32 %v1331, %v774
        %v1333 = vadd.f32 %v1332, %v775
        %v1334 = vadd.f32 %v1333, %v776
        %v1335 = vadd.f32 %v1334, %v777
        %v1336 = vadd.f32 %v1335, %v778
        %v1337 = vadd.f32 %v1336, %v779
        %1338 = vadd.xlane.f32.xlu0 %v1337
        %v1339 = vpop.xlane.xlu0 %1338
        %v1340 = vadd.f32 %v780, %v781
        %v1341 = vadd.f32 %v1340, %v782
        %v1342 = vadd.f32 %v1341, %v783
        %v1343 = vadd.f32 %v1342, %v784
        %v1344 = vadd.f32 %v1343, %v785
        %v1345 = vadd.f32 %v1344, %v786
        %v1346 = vadd.f32 %v1345, %v787
        %1347 = vadd.xlane.f32.xlu0 %v1346
        %v1348 = vpop.xlane.xlu0 %1347
        %v1349 = vadd.f32 %v788, %v789
        %v1350 = vadd.f32 %v1349, %v790
        %v1351 = vadd.f32 %v1350, %v791
        %v1352 = vadd.f32 %v1351, %v792
        %v1353 = vadd.f32 %v1352, %v793
        %v1354 = vadd.f32 %v1353, %v794
        %v1355 = vadd.f32 %v1354, %v795
        %1356 = vadd.xlane.f32.xlu0 %v1355
        %v1357 = vpop.xlane.xlu0 %1356
        %v1358 = vadd.f32 %v796, %v797
        %v1359 = vadd.f32 %v1358, %v798
        %v1360 = vadd.f32 %v1359, %v799
        %v1361 = vadd.f32 %v1360, %v800
        %v1362 = vadd.f32 %v1361, %v801
        %v1363 = vadd.f32 %v1362, %v802
        %v1364 = vadd.f32 %v1363, %v803
        %1365 = vadd.xlane.f32.xlu0 %v1364
        %v1366 = vpop.xlane.xlu0 %1365
        %v1367 = vadd.f32 %v804, %v805
        %v1368 = vadd.f32 %v1367, %v806
        %v1369 = vadd.f32 %v1368, %v807
        %v1370 = vadd.f32 %v1369, %v808
        %v1371 = vadd.f32 %v1370, %v809
        %v1372 = vadd.f32 %v1371, %v810
        %v1373 = vadd.f32 %v1372, %v811
        %1374 = vadd.xlane.f32.xlu0 %v1373
        %v1375 = vpop.xlane.xlu0 %1374
        %v1376 = vadd.f32 %v812, %v813
        %v1377 = vadd.f32 %v1376, %v814
        %v1378 = vadd.f32 %v1377, %v815
        %v1379 = vadd.f32 %v1378, %v816
        %v1380 = vadd.f32 %v1379, %v817
        %v1381 = vadd.f32 %v1380, %v818
        %v1382 = vadd.f32 %v1381, %v819
        %1383 = vadd.xlane.f32.xlu0 %v1382
        %v1384 = vpop.xlane.xlu0 %1383
        %v1385 = vadd.f32 %v820, %v821
        %v1386 = vadd.f32 %v1385, %v822
        %v1387 = vadd.f32 %v1386, %v823
        %v1388 = vadd.f32 %v1387, %v824
        %v1389 = vadd.f32 %v1388, %v825
        %v1390 = vadd.f32 %v1389, %v826
        %v1391 = vadd.f32 %v1390, %v827
        %1392 = vadd.xlane.f32.xlu0 %v1391
        %v1393 = vpop.xlane.xlu0 %1392
        %v1394 = vadd.f32 %v828, %v829
        %v1395 = vadd.f32 %v1394, %v830
        %v1396 = vadd.f32 %v1395, %v831
        %v1397 = vadd.f32 %v1396, %v832
        %v1398 = vadd.f32 %v1397, %v833
        %v1399 = vadd.f32 %v1398, %v834
        %v1400 = vadd.f32 %v1399, %v835
        %1401 = vadd.xlane.f32.xlu0 %v1400
        %v1402 = vpop.xlane.xlu0 %1401
        %v1403 = vadd.f32 %v836, %v837
        %v1404 = vadd.f32 %v1403, %v838
        %v1405 = vadd.f32 %v1404, %v839
        %v1406 = vadd.f32 %v1405, %v840
        %v1407 = vadd.f32 %v1406, %v841
        %v1408 = vadd.f32 %v1407, %v842
        %v1409 = vadd.f32 %v1408, %v843
        %1410 = vadd.xlane.f32.xlu0 %v1409
        %v1411 = vpop.xlane.xlu0 %1410
        %v1412 = vadd.f32 %v844, %v845
        %v1413 = vadd.f32 %v1412, %v846
        %v1414 = vadd.f32 %v1413, %v847
        %v1415 = vadd.f32 %v1414, %v848
        %v1416 = vadd.f32 %v1415, %v849
        %v1417 = vadd.f32 %v1416, %v850
        %v1418 = vadd.f32 %v1417, %v851
        %1419 = vadd.xlane.f32.xlu0 %v1418
        %v1420 = vpop.xlane.xlu0 %1419
        %v1421 = vadd.f32 %v852, %v853
        %v1422 = vadd.f32 %v1421, %v854
        %v1423 = vadd.f32 %v1422, %v855
        %v1424 = vadd.f32 %v1423, %v856
        %v1425 = vadd.f32 %v1424, %v857
        %v1426 = vadd.f32 %v1425, %v858
        %v1427 = vadd.f32 %v1426, %v859
        %1428 = vadd.xlane.f32.xlu0 %v1427
        %v1429 = vpop.xlane.xlu0 %1428
        %v1430 = vadd.f32 %v860, %v861
        %v1431 = vadd.f32 %v1430, %v862
        %v1432 = vadd.f32 %v1431, %v863
        %v1433 = vadd.f32 %v1432, %v864
        %v1434 = vadd.f32 %v1433, %v865
        %v1435 = vadd.f32 %v1434, %v866
        %v1436 = vadd.f32 %v1435, %v867
        %1437 = vadd.xlane.f32.xlu0 %v1436
        %v1438 = vpop.xlane.xlu0 %1437
        %v1439 = vadd.f32 %v868, %v869
        %v1440 = vadd.f32 %v1439, %v870
        %v1441 = vadd.f32 %v1440, %v871
        %v1442 = vadd.f32 %v1441, %v872
        %v1443 = vadd.f32 %v1442, %v873
        %v1444 = vadd.f32 %v1443, %v874
        %v1445 = vadd.f32 %v1444, %v875
        %1446 = vadd.xlane.f32.xlu0 %v1445
        %v1447 = vpop.xlane.xlu0 %1446
        %v1448 = vadd.f32 %v876, %v877
        %v1449 = vadd.f32 %v1448, %v878
        %v1450 = vadd.f32 %v1449, %v879
        %v1451 = vadd.f32 %v1450, %v880
        %v1452 = vadd.f32 %v1451, %v881
        %v1453 = vadd.f32 %v1452, %v882
        %v1454 = vadd.f32 %v1453, %v883
        %1455 = vadd.xlane.f32.xlu0 %v1454
        %v1456 = vpop.xlane.xlu0 %1455
        %v1457 = vadd.f32 %v884, %v885
        %v1458 = vadd.f32 %v1457, %v886
        %v1459 = vadd.f32 %v1458, %v887
        %v1460 = vadd.f32 %v1459, %v888
        %v1461 = vadd.f32 %v1460, %v889
        %v1462 = vadd.f32 %v1461, %v890
        %v1463 = vadd.f32 %v1462, %v891
        %1464 = vadd.xlane.f32.xlu0 %v1463
        %v1465 = vpop.xlane.xlu0 %1464
        %v1466 = vadd.f32 %v892, %v893
        %v1467 = vadd.f32 %v1466, %v894
        %v1468 = vadd.f32 %v1467, %v895
        %v1469 = vadd.f32 %v1468, %v896
        %v1470 = vadd.f32 %v1469, %v897
        %v1471 = vadd.f32 %v1470, %v898
        %v1472 = vadd.f32 %v1471, %v899
        %1473 = vadd.xlane.f32.xlu0 %v1472
        %v1474 = vpop.xlane.xlu0 %1473
        %v1475 = vadd.f32 %v900, %v901
        %v1476 = vadd.f32 %v1475, %v902
        %v1477 = vadd.f32 %v1476, %v903
        %v1478 = vadd.f32 %v1477, %v904
        %v1479 = vadd.f32 %v1478, %v905
        %v1480 = vadd.f32 %v1479, %v906
        %v1481 = vadd.f32 %v1480, %v907
        %1482 = vadd.xlane.f32.xlu0 %v1481
        %v1483 = vpop.xlane.xlu0 %1482
        %v1484 = vadd.f32 %v916, 1.0
        %v1485 = vadd.f32 %v925, 1.0
        %v1486 = vadd.f32 %v934, 1.0
        %v1487 = vadd.f32 %v943, 1.0
        %v1488 = vadd.f32 %v952, 1.0
        %v1489 = vadd.f32 %v961, 1.0
        %v1490 = vadd.f32 %v970, 1.0
        %v1491 = vadd.f32 %v979, 1.0
        %v1492 = vadd.f32 %v988, 1.0
        %v1493 = vadd.f32 %v997, 1.0
        %v1494 = vadd.f32 %v1006, 1.0
        %v1495 = vadd.f32 %v1015, 1.0
        %v1496 = vadd.f32 %v1024, 1.0
        %v1497 = vadd.f32 %v1033, 1.0
        %v1498 = vadd.f32 %v1042, 1.0
        %v1499 = vadd.f32 %v1051, 1.0
        %v1500 = vadd.f32 %v1060, 1.0
        %v1501 = vadd.f32 %v1069, 1.0
        %v1502 = vadd.f32 %v1078, 1.0
        %v1503 = vadd.f32 %v1087, 1.0
        %v1504 = vadd.f32 %v1096, 1.0
        %v1505 = vadd.f32 %v1105, 1.0
        %v1506 = vadd.f32 %v1114, 1.0
        %v1507 = vadd.f32 %v1123, 1.0
        %v1508 = vadd.f32 %v1132, 1.0
        %v1509 = vadd.f32 %v1141, 1.0
        %v1510 = vadd.f32 %v1150, 1.0
        %v1511 = vadd.f32 %v1159, 1.0
        %v1512 = vadd.f32 %v1168, 1.0
        %v1513 = vadd.f32 %v1177, 1.0
        %v1514 = vadd.f32 %v1186, 1.0
        %v1515 = vadd.f32 %v1195, 1.0
        %v1516 = vadd.f32 %v1204, 1.0
        %v1517 = vadd.f32 %v1213, 1.0
        %v1518 = vadd.f32 %v1222, 1.0
        %v1519 = vadd.f32 %v1231, 1.0
        %v1520 = vadd.f32 %v1240, 1.0
        %v1521 = vadd.f32 %v1249, 1.0
        %v1522 = vadd.f32 %v1258, 1.0
        %v1523 = vadd.f32 %v1267, 1.0
        %v1524 = vadd.f32 %v1276, 1.0
        %v1525 = vadd.f32 %v1285, 1.0
        %v1526 = vadd.f32 %v1294, 1.0
        %v1527 = vadd.f32 %v1303, 1.0
        %v1528 = vadd.f32 %v1312, 1.0
        %v1529 = vadd.f32 %v1321, 1.0
        %v1530 = vadd.f32 %v1330, 1.0
        %v1531 = vadd.f32 %v1339, 1.0
        %v1532 = vadd.f32 %v1348, 1.0
        %v1533 = vadd.f32 %v1357, 1.0
        %v1534 = vadd.f32 %v1366, 1.0
        %v1535 = vadd.f32 %v1375, 1.0
        %v1536 = vadd.f32 %v1384, 1.0
        %v1537 = vadd.f32 %v1393, 1.0
        %v1538 = vadd.f32 %v1402, 1.0
        %v1539 = vadd.f32 %v1411, 1.0
        %v1540 = vadd.f32 %v1420, 1.0
        %v1541 = vadd.f32 %v1429, 1.0
        %v1542 = vadd.f32 %v1438, 1.0
        %v1543 = vadd.f32 %v1447, 1.0
        %v1544 = vadd.f32 %v1456, 1.0
        %v1545 = vadd.f32 %v1465, 1.0
        %v1546 = vadd.f32 %v1474, 1.0
        %v1547 = vadd.f32 %v1483, 1.0
        %v1548 = vrsqrt.pop %v1484
        %v1549 = vrsqrt.pop %v1485
        %v1550 = vrsqrt.pop %v1486
        %v1551 = vrsqrt.pop %v1487
        %v1552 = vrsqrt.pop %v1488
        %v1553 = vrsqrt.pop %v1489
        %v1554 = vrsqrt.pop %v1490
        %v1555 = vrsqrt.pop %v1491
        %v1556 = vrsqrt.pop %v1492
        %v1557 = vrsqrt.pop %v1493
        %v1558 = vrsqrt.pop %v1494
        %v1559 = vrsqrt.pop %v1495
        %v1560 = vrsqrt.pop %v1496
        %v1561 = vrsqrt.pop %v1497
        %v1562 = vrsqrt.pop %v1498
        %v1563 = vrsqrt.pop %v1499
        %v1564 = vrsqrt.pop %v1500
        %v1565 = vrsqrt.pop %v1501
        %v1566 = vrsqrt.pop %v1502
        %v1567 = vrsqrt.pop %v1503
        %v1568 = vrsqrt.pop %v1504
        %v1569 = vrsqrt.pop %v1505
        %v1570 = vrsqrt.pop %v1506
        %v1571 = vrsqrt.pop %v1507
        %v1572 = vrsqrt.pop %v1508
        %v1573 = vrsqrt.pop %v1509
        %v1574 = vrsqrt.pop %v1510
        %v1575 = vrsqrt.pop %v1511
        %v1576 = vrsqrt.pop %v1512
        %v1577 = vrsqrt.pop %v1513
        %v1578 = vrsqrt.pop %v1514
        %v1579 = vrsqrt.pop %v1515
        %v1580 = vrsqrt.pop %v1516
        %v1581 = vrsqrt.pop %v1517
        %v1582 = vrsqrt.pop %v1518
        %v1583 = vrsqrt.pop %v1519
        %v1584 = vrsqrt.pop %v1520
        %v1585 = vrsqrt.pop %v1521
        %v1586 = vrsqrt.pop %v1522
        %v1587 = vrsqrt.pop %v1523
        %v1588 = vrsqrt.pop %v1524
        %v1589 = vrsqrt.pop %v1525
        %v1590 = vrsqrt.pop %v1526
        %v1591 = vrsqrt.pop %v1527
        %v1592 = vrsqrt.pop %v1528
        %v1593 = vrsqrt.pop %v1529
        %v1594 = vrsqrt.pop %v1530
        %v1595 = vrsqrt.pop %v1531
        %v1596 = vrsqrt.pop %v1532
        %v1597 = vrsqrt.pop %v1533
        %v1598 = vrsqrt.pop %v1534
        %v1599 = vrsqrt.pop %v1535
        %v1600 = vrsqrt.pop %v1536
        %v1601 = vrsqrt.pop %v1537
        %v1602 = vrsqrt.pop %v1538
        %v1603 = vrsqrt.pop %v1539
        %v1604 = vrsqrt.pop %v1540
        %v1605 = vrsqrt.pop %v1541
        %v1606 = vrsqrt.pop %v1542
        %v1607 = vrsqrt.pop %v1543
        %v1608 = vrsqrt.pop %v1544
        %v1609 = vrsqrt.pop %v1545
        %v1610 = vrsqrt.pop %v1546
        %v1611 = vrsqrt.pop %v1547
        %vm1612 = vcmask 7168
        %1613 = vst.msk [vmem:[%s138] sm:$0xff] %vm1612, %v1548
        %1614 = vst.msk [vmem:[%s138 + $0x8] sm:$0xff] %vm1612, %v1549
        %1615 = vst.msk [vmem:[%s138 + $0x10] sm:$0xff] %vm1612, %v1550
        %1616 = vst.msk [vmem:[%s138 + $0x18] sm:$0xff] %vm1612, %v1551
        %1617 = vst.msk [vmem:[%s138 + $0x20] sm:$0xff] %vm1612, %v1552
        %1618 = vst.msk [vmem:[%s138 + $0x28] sm:$0xff] %vm1612, %v1553
        %1619 = vst.msk [vmem:[%s138 + $0x30] sm:$0xff] %vm1612, %v1554
        %1620 = vst.msk [vmem:[%s138 + $0x38] sm:$0xff] %vm1612, %v1555
        %1621 = vst.msk [vmem:[%s138 + $0x40] sm:$0xff] %vm1612, %v1556
        %1622 = vst.msk [vmem:[%s138 + $0x48] sm:$0xff] %vm1612, %v1557
        %1623 = vst.msk [vmem:[%s138 + $0x50] sm:$0xff] %vm1612, %v1558
        %1624 = vst.msk [vmem:[%s138 + $0x58] sm:$0xff] %vm1612, %v1559
        %1625 = vst.msk [vmem:[%s138 + $0x60] sm:$0xff] %vm1612, %v1560
        %1626 = vst.msk [vmem:[%s138 + $0x68] sm:$0xff] %vm1612, %v1561
        %1627 = vst.msk [vmem:[%s138 + $0x70] sm:$0xff] %vm1612, %v1562
        %1628 = vst.msk [vmem:[%s138 + $0x78] sm:$0xff] %vm1612, %v1563
        %1629 = vst.msk [vmem:[%s138 + $0x80] sm:$0xff] %vm1612, %v1564
        %1630 = vst.msk [vmem:[%s138 + $0x88] sm:$0xff] %vm1612, %v1565
        %1631 = vst.msk [vmem:[%s138 + $0x90] sm:$0xff] %vm1612, %v1566
        %1632 = vst.msk [vmem:[%s138 + $0x98] sm:$0xff] %vm1612, %v1567
        %1633 = vst.msk [vmem:[%s138 + $0xa0] sm:$0xff] %vm1612, %v1568
        %1634 = vst.msk [vmem:[%s138 + $0xa8] sm:$0xff] %vm1612, %v1569
        %1635 = vst.msk [vmem:[%s138 + $0xb0] sm:$0xff] %vm1612, %v1570
        %1636 = vst.msk [vmem:[%s138 + $0xb8] sm:$0xff] %vm1612, %v1571
        %1637 = vst.msk [vmem:[%s138 + $0xc0] sm:$0xff] %vm1612, %v1572
        %1638 = vst.msk [vmem:[%s138 + $0xc8] sm:$0xff] %vm1612, %v1573
        %1639 = vst.msk [vmem:[%s138 + $0xd0] sm:$0xff] %vm1612, %v1574
        %1640 = vst.msk [vmem:[%s138 + $0xd8] sm:$0xff] %vm1612, %v1575
        %1641 = vst.msk [vmem:[%s138 + $0xe0] sm:$0xff] %vm1612, %v1576
        %1642 = vst.msk [vmem:[%s138 + $0xe8] sm:$0xff] %vm1612, %v1577
        %1643 = vst.msk [vmem:[%s138 + $0xf0] sm:$0xff] %vm1612, %v1578
        %1644 = vst.msk [vmem:[%s138 + $0xf8] sm:$0xff] %vm1612, %v1579
        %1645 = vst.msk [vmem:[%s138 + $0x100] sm:$0xff] %vm1612, %v1580
        %1646 = vst.msk [vmem:[%s138 + $0x108] sm:$0xff] %vm1612, %v1581
        %1647 = vst.msk [vmem:[%s138 + $0x110] sm:$0xff] %vm1612, %v1582
        %1648 = vst.msk [vmem:[%s138 + $0x118] sm:$0xff] %vm1612, %v1583
        %1649 = vst.msk [vmem:[%s138 + $0x120] sm:$0xff] %vm1612, %v1584
        %1650 = vst.msk [vmem:[%s138 + $0x128] sm:$0xff] %vm1612, %v1585
        %1651 = vst.msk [vmem:[%s138 + $0x130] sm:$0xff] %vm1612, %v1586
        %1652 = vst.msk [vmem:[%s138 + $0x138] sm:$0xff] %vm1612, %v1587
        %1653 = vst.msk [vmem:[%s138 + $0x140] sm:$0xff] %vm1612, %v1588
        %1654 = vst.msk [vmem:[%s138 + $0x148] sm:$0xff] %vm1612, %v1589
        %1655 = vst.msk [vmem:[%s138 + $0x150] sm:$0xff] %vm1612, %v1590
        %1656 = vst.msk [vmem:[%s138 + $0x158] sm:$0xff] %vm1612, %v1591
        %1657 = vst.msk [vmem:[%s138 + $0x160] sm:$0xff] %vm1612, %v1592
        %1658 = vst.msk [vmem:[%s138 + $0x168] sm:$0xff] %vm1612, %v1593
        %1659 = vst.msk [vmem:[%s138 + $0x170] sm:$0xff] %vm1612, %v1594
        %1660 = vst.msk [vmem:[%s138 + $0x178] sm:$0xff] %vm1612, %v1595
        %1661 = vst.msk [vmem:[%s138 + $0x180] sm:$0xff] %vm1612, %v1596
        %1662 = vst.msk [vmem:[%s138 + $0x188] sm:$0xff] %vm1612, %v1597
        %1663 = vst.msk [vmem:[%s138 + $0x190] sm:$0xff] %vm1612, %v1598
        %1664 = vst.msk [vmem:[%s138 + $0x198] sm:$0xff] %vm1612, %v1599
        %1665 = vst.msk [vmem:[%s138 + $0x1a0] sm:$0xff] %vm1612, %v1600
        %1666 = vst.msk [vmem:[%s138 + $0x1a8] sm:$0xff] %vm1612, %v1601
        %1667 = vst.msk [vmem:[%s138 + $0x1b0] sm:$0xff] %vm1612, %v1602
        %1668 = vst.msk [vmem:[%s138 + $0x1b8] sm:$0xff] %vm1612, %v1603
        %1669 = vst.msk [vmem:[%s138 + $0x1c0] sm:$0xff] %vm1612, %v1604
        %1670 = vst.msk [vmem:[%s138 + $0x1c8] sm:$0xff] %vm1612, %v1605
        %1671 = vst.msk [vmem:[%s138 + $0x1d0] sm:$0xff] %vm1612, %v1606
        %1672 = vst.msk [vmem:[%s138 + $0x1d8] sm:$0xff] %vm1612, %v1607
        %1673 = vst.msk [vmem:[%s138 + $0x1e0] sm:$0xff] %vm1612, %v1608
        %1674 = vst.msk [vmem:[%s138 + $0x1e8] sm:$0xff] %vm1612, %v1609
        %1675 = vst.msk [vmem:[%s138 + $0x1f0] sm:$0xff] %vm1612, %v1610
        %1676 = vst.msk [vmem:[%s138 + $0x1f8] sm:$0xff] %vm1612, %v1611
        %s1677 = smul.u32 64, %s15
        %p1678 = scmp.lt.s32.totalorder %s1677, 127
        %s1679 = scalar_select %p1678, %s1677, 127
        %s1680 = smul.addr %s1679, 8
        %s1681 = scalar_lea.vmem %s1, %s1680
        // Predicated region
        $region29: #{tpu_custom_call.1} parent=23 // pred_check
          %p1682 = pneg %p59
        $region30: #{tpu_custom_call.1} parent=23 // pred_check_branch
          %1684 = sbr.rel (%p1682) target = $region32
        $region31: #{tpu_custom_call.1} parent=23 // pred_region
          %s1685 = smul.u32 64, %s15
        $region32: #{tpu_custom_call.1} parent=23 // pred_fallthru
          _
      $region24: #{tpu_custom_call.1} parent=5 // pred_fallthru
        _
      %p1686 = scmp.le.s32.totalorder 2, %s10
      // Predicated region
      $region33: #{tpu_custom_call.1} parent=5 // pred_check
        %p1687 = pneg %p1686
      $region34: #{tpu_custom_call.1} parent=5 // pred_check_branch
        %1689 = sbr.rel (%p1687) target = $region36
      $region35: #{tpu_custom_call.1} parent=5 // pred_region
        %s1690 = ssub.s32 %s10, 2
        // Predicated region
        $region37: #{tpu_custom_call.1} parent=35 // pred_check
          %p1691 = pneg %p65
        $region38: #{tpu_custom_call.1} parent=35 // pred_check_branch
          %1693 = sbr.rel (%p1691) target = $region40
        $region39: #{tpu_custom_call.1} parent=35 // pred_region
          %s1694 = smul.u32 64, %s16
          %p1695 = scmp.lt.s32.totalorder %s1694, 127
          %s1696 = scalar_select %p1695, %s1694, 127
          %s1697 = smul.addr %s1696, 8
          %s1698 = scalar_lea.vmem %s1, %s1697
        $region40: #{tpu_custom_call.1} parent=35 // pred_fallthru
          _
      $region36: #{tpu_custom_call.1} parent=5 // pred_fallthru
        _
    $region6: #{tpu_custom_call.1} parent=1 // loop_footer
      %s14 = sadd.s32 1, %s10
    $region7: #{tpu_custom_call.1} parent=1 // loop_footer_branch
      %9 = sbr.rel target = $region3
    $region8: #{tpu_custom_call.1} parent=1 // loop_exit
      _
    %1699 = vsyncpa [#allocation3], 1
    %s1700 = scalar_lea.sflag [#allocation3], 1
    %1701 = vsyncpa %s1700, 1

</llo_original>
